<compile_context>
chip_gen: v7x
topology: tpu7x:2x2x1
jax: 0.10.0
libtpu: 0.0.40
codegen_flags: <defaults>
</compile_context>

<pallas_src>
import numpy as np
import jax
import jax.numpy as jnp
from jax.experimental import pallas as pl
from jax.experimental.pallas import tpu as pltpu

GAMMA = 0.1  # SVR(kernel='rbf', gamma=0.1) fixed in the module __init__


# ----------------------------------------------------------------------------
# Pallas kernel: fused multi-output RBF-SVR predict + point_locs masking
# ----------------------------------------------------------------------------
def _svr_rbf_kernel(x_ref, svt_ref, svsq_ref, dual_ref, icpt_ref, mask_ref, o_ref):
    """One batch tile.

    x_ref    : (TB, F)     flattened inputs (batch tile)
    svt_ref  : (F, N*D)    support vectors, transposed; column n*D + d = SV n of output d
    svsq_ref : (1, N*D)    ||SV||^2 per column (folded parameter)
    dual_ref : (N, D)      dual coefficients
    icpt_ref : (1, D)      intercepts
    mask_ref : (TB, D)     point_locs as f32 {0,1}
    o_ref    : (TB, D)
    """
    x = x_ref[...]                                                     # (TB, F)
    # ||x - s||^2 = ||x||^2 + ||s||^2 - 2 x.s : one MXU matmul for all B*N*D pairs.
    cross = jnp.dot(x, svt_ref[...], preferred_element_type=jnp.float32)   # (TB, N*D)
    x_sq = jnp.sum(x * x, axis=-1, keepdims=True)                      # (TB, 1)
    d2 = x_sq + svsq_ref[...] - 2.0 * cross                            # (TB, N*D)
    k = jnp.exp(-GAMMA * d2)                                           # EUP, (TB, N*D)

    # Weighted sum over the N support vectors of each output.  Columns are laid
    # out n-major (n*D + d) so the output dim D stays on the 128-lane axis and
    # the reduction over N is a sublane-direction reduce.
    TB = x.shape[0]
    N, D = dual_ref.shape
    kr = k.reshape(TB, N, D)
    y = jnp.sum(kr * dual_ref[...][None, :, :], axis=1) + icpt_ref[...]    # (TB, D)

    o_ref[...] = y * mask_ref[...]                                     # y[~point_locs] = 0


# ----------------------------------------------------------------------------
# Wrapper
# ----------------------------------------------------------------------------
def svr_forward(x, point_locs, params, *, batch_tile=8):
    """HyeonukCandidateModel4.forward((x, point_locs))."""
    svt, sv_sq = params['svt'], params['sv_sq']
    dual, intercept = params['dual'], params['intercept']
    F = svt.shape[0]
    N, D = dual.shape

    B = x.shape[0]
    x_flat = x.reshape(B, -1).astype(jnp.float32)       # x = x.reshape(B, -1)
    assert x_flat.shape[1] == F
    mask = point_locs.astype(jnp.float32)               # (B, D)

    TB = batch_tile
    B_pad = ((B + TB - 1) // TB) * TB
    if B_pad != B:
        x_flat = jnp.pad(x_flat, ((0, B_pad - B), (0, 0)))
        mask = jnp.pad(mask, ((0, B_pad - B), (0, 0)))

    out = pl.pallas_call(
        _svr_rbf_kernel,
        out_shape=jax.ShapeDtypeStruct((B_pad, D), jnp.float32),
        grid_spec=pltpu.PrefetchScalarGridSpec(
            num_scalar_prefetch=0,
            grid=(B_pad // TB,),
            in_specs=[
                pl.BlockSpec((TB, F), lambda i: (i, 0)),      # x: streamed over batch tiles
                pl.BlockSpec((F, N * D), lambda i: (0, 0)),   # SV^T: resident across grid
                pl.BlockSpec((1, N * D), lambda i: (0, 0)),   # ||SV||^2: resident
                pl.BlockSpec((N, D), lambda i: (0, 0)),       # dual coefs: resident
                pl.BlockSpec((1, D), lambda i: (0, 0)),       # intercepts: resident
                pl.BlockSpec((TB, D), lambda i: (i, 0)),      # point_locs mask tile
            ],
            out_specs=pl.BlockSpec((TB, D), lambda i: (i, 0)),
        ),
        compiler_params=pltpu.CompilerParams(
            dimension_semantics=("parallel",),     # shard batch tiles across TCs (v7x)
            vmem_limit_bytes=32 * 1024 * 1024,     # params ~4 MiB; well within budget
        ),
    )(x_flat, svt, sv_sq, dual, intercept, mask)
    return out[:B]


# ----------------------------------------------------------------------------
# Synthetic "fitted" SVR parameters (deterministic)
# ----------------------------------------------------------------------------
def init_params(key, *, n_features, n_outputs, n_sv):
    k_sv, k_dual, k_icpt = jax.random.split(key, 3)
    sv = 0.1 * jax.random.normal(k_sv, (n_sv, n_outputs, n_features), jnp.float32)
    dual = jax.random.uniform(k_dual, (n_sv, n_outputs), jnp.float32, -1.0, 1.0)
    intercept = 0.05 * jax.random.normal(k_icpt, (1, n_outputs), jnp.float32)
    # Pre-transpose / pre-fold at parameter-build time (no per-call reshuffling).
    svt = jnp.asarray(sv.reshape(n_sv * n_outputs, n_features).T)          # (F, N*D)
    sv_sq = jnp.sum(sv * sv, axis=-1).reshape(1, n_sv * n_outputs)         # (1, N*D)
    return {'svt': svt, 'sv_sq': sv_sq, 'dual': dual, 'intercept': intercept}


# ----------------------------------------------------------------------------
# Pure-JAX reference (direct ||x - s||^2 form) for validation
# ----------------------------------------------------------------------------
def ref_forward(x, point_locs, params):
    svt, dual, intercept = params['svt'], params['dual'], params['intercept']
    F = svt.shape[0]
    N, D = dual.shape
    B = x.shape[0]
    x_flat = x.reshape(B, -1).astype(jnp.float32)
    sv = svt.T.reshape(N, D, F)
    d2 = jnp.sum((x_flat[:, None, None, :] - sv[None, :, :, :]) ** 2, axis=-1)  # (B,N,D)
    k = jnp.exp(-GAMMA * d2)
    y = jnp.sum(k * dual[None, :, :], axis=1) + intercept
    return jnp.where(point_locs, y, 0.0)


# ----------------------------------------------------------------------------
if __name__ == "__main__":
    B = 2
    GRID_T, GRID_M = 8, 16        # sparse vol-surface grid -> 128 flattened features
    N_OUT = 128                   # surface points predicted by the multi-output SVR
    N_SV = 32                     # support vectors per output

    key = jax.random.PRNGKey(0)
    k_p, k_x, k_loc = jax.random.split(key, 3)
    params = init_params(k_p, n_features=GRID_T * GRID_M, n_outputs=N_OUT, n_sv=N_SV)

    x = 0.1 * jax.random.normal(k_x, (B, GRID_T, GRID_M), jnp.float32)
    point_locs = jax.random.uniform(k_loc, (B, N_OUT)) > 0.3      # boolean mask

    fwd = jax.jit(lambda xx, locs: svr_forward(xx, locs, params))
    y = fwd(x, point_locs)
    jax.block_until_ready(y)

    y_ref = ref_forward(x, point_locs, params)

    assert y.shape == (B, N_OUT), y.shape
    assert bool(jnp.all(jnp.isfinite(y)))
    # masked-out points must be exactly zero
    assert bool(jnp.all(jnp.where(point_locs, 0.0, jnp.abs(y)) == 0.0))
    np.testing.assert_allclose(np.asarray(y), np.asarray(y_ref), rtol=1e-2, atol=1e-2)
    print("KERNEL_OK")
</pallas_src>

<mosaic_0001>
module attributes {stable_mosaic.version = 11 : i64} {
  func.func @_svr_rbf_kernel(%arg0: i32, %arg1: memref<8x128xf32, #tpu.memory_space<vmem>>, %arg2: memref<128x4096xf32, #tpu.memory_space<vmem>>, %arg3: memref<1x4096xf32, #tpu.memory_space<vmem>>, %arg4: memref<32x128xf32, #tpu.memory_space<vmem>>, %arg5: memref<1x128xf32, #tpu.memory_space<vmem>>, %arg6: memref<8x128xf32, #tpu.memory_space<vmem>>, %arg7: memref<8x128xf32, #tpu.memory_space<vmem>>) attributes {dimension_semantics = [#tpu.dimension_semantics<parallel>], iteration_bounds = array<i64: 1>, scalar_prefetch = 0 : i64, scratch_operands = 0 : i64, tpu.core_type = #tpu.core_type<tc>, window_params = [{transform_indices = @transform_0, window_bounds = array<i64: 8, 128>}, {pipeline_mode = #tpu.pipeline_mode<synchronous>, transform_indices = @transform_1, window_bounds = array<i64: 128, 4096>}, {pipeline_mode = #tpu.pipeline_mode<synchronous>, transform_indices = @transform_2, window_bounds = array<i64: 1, 4096>}, {pipeline_mode = #tpu.pipeline_mode<synchronous>, transform_indices = @transform_3, window_bounds = array<i64: 32, 128>}, {pipeline_mode = #tpu.pipeline_mode<synchronous>, transform_indices = @transform_4, window_bounds = array<i64: 1, 128>}, {transform_indices = @transform_5, window_bounds = array<i64: 8, 128>}, {transform_indices = @transform_6, window_bounds = array<i64: 8, 128>}]} {
    %c0 = arith.constant 0 : index
    %c0_0 = arith.constant 0 : index
    %0 = vector.load %arg1[%c0, %c0_0] : memref<8x128xf32, #tpu.memory_space<vmem>>, vector<8x128xf32>
    %c0_1 = arith.constant 0 : index
    %c0_2 = arith.constant 0 : index
    %1 = vector.load %arg2[%c0_1, %c0_2] : memref<128x4096xf32, #tpu.memory_space<vmem>>, vector<128x4096xf32>
    %cst = arith.constant dense<0.000000e+00> : vector<8x4096xf32>
    %2 = tpu.matmul %0, %1, %cst {dimension_numbers = #tpu.dot_dimension_numbers<[1], [0], [0], [1], [0, 0, 1, 1], [], []>} : vector<8x128xf32>, vector<128x4096xf32>, vector<8x4096xf32> -> vector<8x4096xf32>
    %3 = arith.mulf %0, %0 : vector<8x128xf32>
    %cst_3 = arith.constant dense<0.000000e+00> : vector<8xf32>
    %4 = vector.multi_reduction <add>, %3, %cst_3 [1] : vector<8x128xf32> to vector<8xf32>
    %5 = vector.shape_cast %4 : vector<8xf32> to vector<8x1xf32>
    %c0_4 = arith.constant 0 : index
    %c0_5 = arith.constant 0 : index
    %6 = vector.load %arg3[%c0_4, %c0_5] : memref<1x4096xf32, #tpu.memory_space<vmem>>, vector<1x4096xf32>
    %7 = vector.broadcast %5 : vector<8x1xf32> to vector<8x4096xf32>
    %8 = vector.broadcast %6 : vector<1x4096xf32> to vector<8x4096xf32>
    %9 = arith.addf %7, %8 : vector<8x4096xf32>
    %cst_6 = arith.constant 2.000000e+00 : f32
    %10 = vector.broadcast %cst_6 : f32 to vector<8x4096xf32>
    %11 = arith.mulf %10, %2 : vector<8x4096xf32>
    %12 = arith.subf %9, %11 : vector<8x4096xf32>
    %cst_7 = arith.constant -1.000000e-01 : f32
    %13 = vector.broadcast %cst_7 : f32 to vector<8x4096xf32>
    %14 = arith.mulf %13, %12 : vector<8x4096xf32>
    %15 = math.exp %14 : vector<8x4096xf32>
    %16 = vector.shape_cast %15 : vector<8x4096xf32> to vector<8x32x128xf32>
    %c0_8 = arith.constant 0 : index
    %c0_9 = arith.constant 0 : index
    %17 = vector.load %arg4[%c0_8, %c0_9] : memref<32x128xf32, #tpu.memory_space<vmem>>, vector<32x128xf32>
    %18 = vector.shape_cast %17 : vector<32x128xf32> to vector<1x32x128xf32>
    %19 = vector.broadcast %18 : vector<1x32x128xf32> to vector<8x32x128xf32>
    %20 = arith.mulf %16, %19 : vector<8x32x128xf32>
    %cst_10 = arith.constant dense<0.000000e+00> : vector<8x128xf32>
    %21 = vector.multi_reduction <add>, %20, %cst_10 [1] : vector<8x32x128xf32> to vector<8x128xf32>
    %c0_11 = arith.constant 0 : index
    %c0_12 = arith.constant 0 : index
    %22 = vector.load %arg5[%c0_11, %c0_12] : memref<1x128xf32, #tpu.memory_space<vmem>>, vector<1x128xf32>
    %23 = vector.broadcast %22 : vector<1x128xf32> to vector<8x128xf32>
    %24 = arith.addf %21, %23 : vector<8x128xf32>
    %c0_13 = arith.constant 0 : index
    %c0_14 = arith.constant 0 : index
    %25 = vector.load %arg6[%c0_13, %c0_14] : memref<8x128xf32, #tpu.memory_space<vmem>>, vector<8x128xf32>
    %26 = arith.mulf %24, %25 : vector<8x128xf32>
    %c0_15 = arith.constant 0 : index
    %c0_16 = arith.constant 0 : index
    %27 = vector.load %arg7[%c0_15, %c0_16] : memref<8x128xf32, #tpu.memory_space<vmem>>, vector<8x128xf32>
    tpu.vector_store %arg7[%c0_15, %c0_16], %26 {strides = array<i32>} : memref<8x128xf32, #tpu.memory_space<vmem>>, vector<8x128xf32>,
    return
  }
  func.func @transform_0(%arg0: i32) -> (i32, i32) {
    %c0_i32 = arith.constant 0 : i32
    %c0_i32_0 = arith.constant 0 : i32
    return %arg0, %c0_i32 : i32, i32
  }
  func.func @transform_1(%arg0: i32) -> (i32, i32) {
    %c0_i32 = arith.constant 0 : i32
    %c0_i32_0 = arith.constant 0 : i32
    %c0_i32_1 = arith.constant 0 : i32
    return %c0_i32, %c0_i32_0 : i32, i32
  }
  func.func @transform_2(%arg0: i32) -> (i32, i32) {
    %c0_i32 = arith.constant 0 : i32
    %c0_i32_0 = arith.constant 0 : i32
    %c0_i32_1 = arith.constant 0 : i32
    return %c0_i32, %c0_i32_0 : i32, i32
  }
  func.func @transform_3(%arg0: i32) -> (i32, i32) {
    %c0_i32 = arith.constant 0 : i32
    %c0_i32_0 = arith.constant 0 : i32
    %c0_i32_1 = arith.constant 0 : i32
    return %c0_i32, %c0_i32_0 : i32, i32
  }
  func.func @transform_4(%arg0: i32) -> (i32, i32) {
    %c0_i32 = arith.constant 0 : i32
    %c0_i32_0 = arith.constant 0 : i32
    %c0_i32_1 = arith.constant 0 : i32
    return %c0_i32, %c0_i32_0 : i32, i32
  }
  func.func @transform_5(%arg0: i32) -> (i32, i32) {
    %c0_i32 = arith.constant 0 : i32
    %c0_i32_0 = arith.constant 0 : i32
    return %arg0, %c0_i32 : i32, i32
  }
  func.func @transform_6(%arg0: i32) -> (i32, i32) {
    %c0_i32 = arith.constant 0 : i32
    %c0_i32_0 = arith.constant 0 : i32
    return %arg0, %c0_i32 : i32, i32
  }
}

</mosaic_0001>

<llo_original>
// kernel: _lambda_.1
$region0: #{_lambda_.1}
  #allocation0 [shape = 'u32[]', space=smem, size = 0x4, offset = 0x4, fixed_abs, tag = 'smem constant byte address 0x4 - core index']
  #allocation1 [shape = 'u32[144,128]{1,0:T(1,128)}', space=vmem, size = 0x12000, scoped, tag = 'internal scratch']
  %s0 = inlined_call_operand.vmem [shape: f32[8,128], index: 0, kind: input, shape index: {}]
  %s1 = inlined_call_operand.hbm [shape: f32[128,4096], index: 1, kind: input, shape index: {}]
  %s2 = inlined_call_operand.hbm [shape: f32[1,4096], index: 2, kind: input, shape index: {}]
  %s3 = inlined_call_operand.hbm [shape: f32[32,128], index: 3, kind: input, shape index: {}]
  %s4 = inlined_call_operand.hbm [shape: f32[1,128], index: 4, kind: input, shape index: {}]
  %s5 = inlined_call_operand.vmem [shape: f32[8,128], index: 5, kind: input, shape index: {}]
  %s6 = inlined_call_operand.vmem [shape: f32[8,128], index: 6, kind: output, shape index: {}]
  %s7 = sld [smem:[#allocation0]]
  $region50: #{_lambda_.1} parent=0
    _
  %s9 = ssub.s32 1, %s7
  %s10 = scalar_select 0, %s9, %s7
  $region1: #{_lambda_.1} parent=0
    #allocation2 [shape = 'u8[2097152]{0}', space=vmem, size = 0x200000, scoped, tag = 'input window, operand 1, single buffered']
    #allocation3 [shape = 's32[1]{0}', space=sflag, size = 0x4, scoped, tag = 'scoped memory for _lambda_.1']
    #allocation4 [shape = 'u8[16384]{0}', space=vmem, size = 0x4000, scoped, tag = 'input window, operand 2, single buffered']
    #allocation5 [shape = 's32[1]{0}', space=sflag, size = 0x4, scoped, tag = 'scoped memory for _lambda_.1']
    #allocation6 [shape = 'u8[16384]{0}', space=vmem, size = 0x4000, scoped, tag = 'input window, operand 3, single buffered']
    #allocation7 [shape = 'u8[512]{0}', space=vmem, size = 0x400, scoped, tag = 'input window, operand 4, single buffered']
    #allocation8 [shape = 's32[1]{0}', space=sflag, size = 0x4, scoped, tag = 'scoped memory for _lambda_.1']
    %11 = vsyncpa [#allocation3], 0
    %12 = vsyncpa [#allocation5], 0
    %13 = vsyncpa [#allocation8], 0
    // Predicated region
    $region2: #{_lambda_.1} parent=1 // pred_check
      _
    $region3: #{_lambda_.1} parent=1 // pred_check_branch
      %15 = sbr.rel (0) target = $region5
    $region4: #{_lambda_.1} parent=1 // pred_region
      _
    $region5: #{_lambda_.1} parent=1 // pred_fallthru
      _
    // Predicated region
    $region6: #{_lambda_.1} parent=1 // pred_check
      _
    $region7: #{_lambda_.1} parent=1 // pred_check_branch
      %17 = sbr.rel (0) target = $region9
    $region8: #{_lambda_.1} parent=1 // pred_region
      %s19 = ssub.s32 65536, 65536
      %20 = vsyncadd [#allocation3], %s19
      %s21 = sshll.u32 [#allocation2], 4
      %s22 = int_to_ptr.vmem [resolvable:$true] %s21
      %27 = dma.hbm_to_vmem [thread:$0]  %s1, 65536, %s22, [#allocation3], 4096, 4096, 256
    $region9: #{_lambda_.1} parent=1 // pred_fallthru
      _
    // Predicated region
    $region10: #{_lambda_.1} parent=1 // pred_check
      _
    $region11: #{_lambda_.1} parent=1 // pred_check_branch
      %29 = sbr.rel (0) target = $region13
    $region12: #{_lambda_.1} parent=1 // pred_region
      %s31 = ssub.s32 512, 512
      %32 = vsyncadd [#allocation5], %s31
      %s34 = sshll.u32 [#allocation4], 4
      %s35 = int_to_ptr.vmem [resolvable:$true] %s34
      %37 = dma.hbm_to_vmem [thread:$0]  %s2, 512, %s35, [#allocation5]
    $region13: #{_lambda_.1} parent=1 // pred_fallthru
      _
    // Predicated region
    $region14: #{_lambda_.1} parent=1 // pred_check
      _
    $region15: #{_lambda_.1} parent=1 // pred_check_branch
      %39 = sbr.rel (0) target = $region17
    $region16: #{_lambda_.1} parent=1 // pred_region
      %s41 = ssub.s32 512, 512
      %42 = vsyncadd [#allocation5], %s41
      %s43 = sshll.u32 [#allocation6], 4
      %s44 = int_to_ptr.vmem [resolvable:$true] %s43
      %49 = dma.hbm_to_vmem [thread:$0]  %s3, 512, %s44, [#allocation5], 128, 128, 8
    $region17: #{_lambda_.1} parent=1 // pred_fallthru
      _
    // Predicated region
    $region18: #{_lambda_.1} parent=1 // pred_check
      _
    $region19: #{_lambda_.1} parent=1 // pred_check_branch
      %51 = sbr.rel (0) target = $region21
    $region20: #{_lambda_.1} parent=1 // pred_region
      %s53 = ssub.s32 16, 16
      %54 = vsyncadd [#allocation8], %s53
      %s56 = sshll.u32 [#allocation7], 4
      %s57 = int_to_ptr.vmem [resolvable:$true] %s56
      %59 = dma.hbm_to_vmem [thread:$0]  %s4, 16, %s57, [#allocation8]
    $region21: #{_lambda_.1} parent=1 // pred_fallthru
      _
    // Predicated region
    $region22: #{_lambda_.1} parent=1 // pred_check
      _
    $region23: #{_lambda_.1} parent=1 // pred_check_branch
      %61 = sbr.rel (0) target = $region25
    $region24: #{_lambda_.1} parent=1 // pred_region
      _
    $region25: #{_lambda_.1} parent=1 // pred_fallthru
      _
    // Predicated region
    $region26: #{_lambda_.1} parent=1 // pred_check
      _
    $region27: #{_lambda_.1} parent=1 // pred_check_branch
      %63 = sbr.rel (0) target = $region29
    $region28: #{_lambda_.1} parent=1 // pred_region
      %64 = dma.done [#allocation3], 65536
    $region29: #{_lambda_.1} parent=1 // pred_fallthru
      _
    // Predicated region
    $region30: #{_lambda_.1} parent=1 // pred_check
      _
    $region31: #{_lambda_.1} parent=1 // pred_check_branch
      %66 = sbr.rel (0) target = $region33
    $region32: #{_lambda_.1} parent=1 // pred_region
      %67 = dma.done [#allocation5], 512
    $region33: #{_lambda_.1} parent=1 // pred_fallthru
      _
    // Predicated region
    $region34: #{_lambda_.1} parent=1 // pred_check
      _
    $region35: #{_lambda_.1} parent=1 // pred_check_branch
      %69 = sbr.rel (0) target = $region37
    $region36: #{_lambda_.1} parent=1 // pred_region
      %70 = dma.done [#allocation5], 512
    $region37: #{_lambda_.1} parent=1 // pred_fallthru
      _
    // Predicated region
    $region38: #{_lambda_.1} parent=1 // pred_check
      _
    $region39: #{_lambda_.1} parent=1 // pred_check_branch
      %72 = sbr.rel (0) target = $region41
    $region40: #{_lambda_.1} parent=1 // pred_region
      %73 = dma.done [#allocation8], 16
    $region41: #{_lambda_.1} parent=1 // pred_fallthru
      _
    %v74 = vld [vmem:[%s0] sm:$0xff]
    %v75 = vld [vmem:[#allocation2] sm:$0xff]
    %v76 = vld [vmem:[#allocation2 + $0x8] sm:$0xff]
    %v77 = vld [vmem:[#allocation2 + $0x10] sm:$0xff]
    %v78 = vld [vmem:[#allocation2 + $0x18] sm:$0xff]
    %v79 = vld [vmem:[#allocation2 + $0x20] sm:$0xff]
    %v80 = vld [vmem:[#allocation2 + $0x28] sm:$0xff]
    %v81 = vld [vmem:[#allocation2 + $0x30] sm:$0xff]
    %v82 = vld [vmem:[#allocation2 + $0x38] sm:$0xff]
    %v83 = vld [vmem:[#allocation2 + $0x40] sm:$0xff]
    %v84 = vld [vmem:[#allocation2 + $0x48] sm:$0xff]
    %v85 = vld [vmem:[#allocation2 + $0x50] sm:$0xff]
    %v86 = vld [vmem:[#allocation2 + $0x58] sm:$0xff]
    %v87 = vld [vmem:[#allocation2 + $0x60] sm:$0xff]
    %v88 = vld [vmem:[#allocation2 + $0x68] sm:$0xff]
    %v89 = vld [vmem:[#allocation2 + $0x70] sm:$0xff]
    %v90 = vld [vmem:[#allocation2 + $0x78] sm:$0xff]
    %v91 = vld [vmem:[#allocation2 + $0x80] sm:$0xff]
    %v92 = vld [vmem:[#allocation2 + $0x88] sm:$0xff]
    %v93 = vld [vmem:[#allocation2 + $0x90] sm:$0xff]
    %v94 = vld [vmem:[#allocation2 + $0x98] sm:$0xff]
    %v95 = vld [vmem:[#allocation2 + $0xa0] sm:$0xff]
    %v96 = vld [vmem:[#allocation2 + $0xa8] sm:$0xff]
    %v97 = vld [vmem:[#allocation2 + $0xb0] sm:$0xff]
    %v98 = vld [vmem:[#allocation2 + $0xb8] sm:$0xff]
    %v99 = vld [vmem:[#allocation2 + $0xc0] sm:$0xff]
    %v100 = vld [vmem:[#allocation2 + $0xc8] sm:$0xff]
    %v101 = vld [vmem:[#allocation2 + $0xd0] sm:$0xff]
    %v102 = vld [vmem:[#allocation2 + $0xd8] sm:$0xff]
    %v103 = vld [vmem:[#allocation2 + $0xe0] sm:$0xff]
    %v104 = vld [vmem:[#allocation2 + $0xe8] sm:$0xff]
    %v105 = vld [vmem:[#allocation2 + $0xf0] sm:$0xff]
    %v106 = vld [vmem:[#allocation2 + $0xf8] sm:$0xff]
    %v107 = vld [vmem:[#allocation2 + $0x100] sm:$0xff]
    %v108 = vld [vmem:[#allocation2 + $0x108] sm:$0xff]
    %v109 = vld [vmem:[#allocation2 + $0x110] sm:$0xff]
    %v110 = vld [vmem:[#allocation2 + $0x118] sm:$0xff]
    %v111 = vld [vmem:[#allocation2 + $0x120] sm:$0xff]
    %v112 = vld [vmem:[#allocation2 + $0x128] sm:$0xff]
    %v113 = vld [vmem:[#allocation2 + $0x130] sm:$0xff]
    %v114 = vld [vmem:[#allocation2 + $0x138] sm:$0xff]
    %v115 = vld [vmem:[#allocation2 + $0x140] sm:$0xff]
    %v116 = vld [vmem:[#allocation2 + $0x148] sm:$0xff]
    %v117 = vld [vmem:[#allocation2 + $0x150] sm:$0xff]
    %v118 = vld [vmem:[#allocation2 + $0x158] sm:$0xff]
    %v119 = vld [vmem:[#allocation2 + $0x160] sm:$0xff]
    %v120 = vld [vmem:[#allocation2 + $0x168] sm:$0xff]
    %v121 = vld [vmem:[#allocation2 + $0x170] sm:$0xff]
    %v122 = vld [vmem:[#allocation2 + $0x178] sm:$0xff]
    %v123 = vld [vmem:[#allocation2 + $0x180] sm:$0xff]
    %v124 = vld [vmem:[#allocation2 + $0x188] sm:$0xff]
    %v125 = vld [vmem:[#allocation2 + $0x190] sm:$0xff]
    %v126 = vld [vmem:[#allocation2 + $0x198] sm:$0xff]
    %v127 = vld [vmem:[#allocation2 + $0x1a0] sm:$0xff]
    %v128 = vld [vmem:[#allocation2 + $0x1a8] sm:$0xff]
    %v129 = vld [vmem:[#allocation2 + $0x1b0] sm:$0xff]
    %v130 = vld [vmem:[#allocation2 + $0x1b8] sm:$0xff]
    %v131 = vld [vmem:[#allocation2 + $0x1c0] sm:$0xff]
    %v132 = vld [vmem:[#allocation2 + $0x1c8] sm:$0xff]
    %v133 = vld [vmem:[#allocation2 + $0x1d0] sm:$0xff]
    %v134 = vld [vmem:[#allocation2 + $0x1d8] sm:$0xff]
    %v135 = vld [vmem:[#allocation2 + $0x1e0] sm:$0xff]
    %v136 = vld [vmem:[#allocation2 + $0x1e8] sm:$0xff]
    %v137 = vld [vmem:[#allocation2 + $0x1f0] sm:$0xff]
    %v138 = vld [vmem:[#allocation2 + $0x1f8] sm:$0xff]
    %v139 = vld [vmem:[#allocation2 + $0x200] sm:$0xff]
    %v140 = vld [vmem:[#allocation2 + $0x208] sm:$0xff]
    %v141 = vld [vmem:[#allocation2 + $0x210] sm:$0xff]
    %v142 = vld [vmem:[#allocation2 + $0x218] sm:$0xff]
    %v143 = vld [vmem:[#allocation2 + $0x220] sm:$0xff]
    %v144 = vld [vmem:[#allocation2 + $0x228] sm:$0xff]
    %v145 = vld [vmem:[#allocation2 + $0x230] sm:$0xff]
    %v146 = vld [vmem:[#allocation2 + $0x238] sm:$0xff]
    %v147 = vld [vmem:[#allocation2 + $0x240] sm:$0xff]
    %v148 = vld [vmem:[#allocation2 + $0x248] sm:$0xff]
    %v149 = vld [vmem:[#allocation2 + $0x250] sm:$0xff]
    %v150 = vld [vmem:[#allocation2 + $0x258] sm:$0xff]
    %v151 = vld [vmem:[#allocation2 + $0x260] sm:$0xff]
    %v152 = vld [vmem:[#allocation2 + $0x268] sm:$0xff]
    %v153 = vld [vmem:[#allocation2 + $0x270] sm:$0xff]
    %v154 = vld [vmem:[#allocation2 + $0x278] sm:$0xff]
    %v155 = vld [vmem:[#allocation2 + $0x280] sm:$0xff]
    %v156 = vld [vmem:[#allocation2 + $0x288] sm:$0xff]
    %v157 = vld [vmem:[#allocation2 + $0x290] sm:$0xff]
    %v158 = vld [vmem:[#allocation2 + $0x298] sm:$0xff]
    %v159 = vld [vmem:[#allocation2 + $0x2a0] sm:$0xff]
    %v160 = vld [vmem:[#allocation2 + $0x2a8] sm:$0xff]
    %v161 = vld [vmem:[#allocation2 + $0x2b0] sm:$0xff]
    %v162 = vld [vmem:[#allocation2 + $0x2b8] sm:$0xff]
    %v163 = vld [vmem:[#allocation2 + $0x2c0] sm:$0xff]
    %v164 = vld [vmem:[#allocation2 + $0x2c8] sm:$0xff]
    %v165 = vld [vmem:[#allocation2 + $0x2d0] sm:$0xff]
    %v166 = vld [vmem:[#allocation2 + $0x2d8] sm:$0xff]
    %v167 = vld [vmem:[#allocation2 + $0x2e0] sm:$0xff]
    %v168 = vld [vmem:[#allocation2 + $0x2e8] sm:$0xff]
    %v169 = vld [vmem:[#allocation2 + $0x2f0] sm:$0xff]
    %v170 = vld [vmem:[#allocation2 + $0x2f8] sm:$0xff]
    %v171 = vld [vmem:[#allocation2 + $0x300] sm:$0xff]
    %v172 = vld [vmem:[#allocation2 + $0x308] sm:$0xff]
    %v173 = vld [vmem:[#allocation2 + $0x310] sm:$0xff]
    %v174 = vld [vmem:[#allocation2 + $0x318] sm:$0xff]
    %v175 = vld [vmem:[#allocation2 + $0x320] sm:$0xff]
    %v176 = vld [vmem:[#allocation2 + $0x328] sm:$0xff]
    %v177 = vld [vmem:[#allocation2 + $0x330] sm:$0xff]
    %v178 = vld [vmem:[#allocation2 + $0x338] sm:$0xff]
    %v179 = vld [vmem:[#allocation2 + $0x340] sm:$0xff]
    %v180 = vld [vmem:[#allocation2 + $0x348] sm:$0xff]
    %v181 = vld [vmem:[#allocation2 + $0x350] sm:$0xff]
    %v182 = vld [vmem:[#allocation2 + $0x358] sm:$0xff]
    %v183 = vld [vmem:[#allocation2 + $0x360] sm:$0xff]
    %v184 = vld [vmem:[#allocation2 + $0x368] sm:$0xff]
    %v185 = vld [vmem:[#allocation2 + $0x370] sm:$0xff]
    %v186 = vld [vmem:[#allocation2 + $0x378] sm:$0xff]
    %v187 = vld [vmem:[#allocation2 + $0x380] sm:$0xff]
    %v188 = vld [vmem:[#allocation2 + $0x388] sm:$0xff]
    %v189 = vld [vmem:[#allocation2 + $0x390] sm:$0xff]
    %v190 = vld [vmem:[#allocation2 + $0x398] sm:$0xff]
    %v191 = vld [vmem:[#allocation2 + $0x3a0] sm:$0xff]
    %v192 = vld [vmem:[#allocation2 + $0x3a8] sm:$0xff]
    %v193 = vld [vmem:[#allocation2 + $0x3b0] sm:$0xff]
    %v194 = vld [vmem:[#allocation2 + $0x3b8] sm:$0xff]
    %v195 = vld [vmem:[#allocation2 + $0x3c0] sm:$0xff]
    %v196 = vld [vmem:[#allocation2 + $0x3c8] sm:$0xff]
    %v197 = vld [vmem:[#allocation2 + $0x3d0] sm:$0xff]
    %v198 = vld [vmem:[#allocation2 + $0x3d8] sm:$0xff]
    %v199 = vld [vmem:[#allocation2 + $0x3e0] sm:$0xff]
    %v200 = vld [vmem:[#allocation2 + $0x3e8] sm:$0xff]
    %v201 = vld [vmem:[#allocation2 + $0x3f0] sm:$0xff]
    %v202 = vld [vmem:[#allocation2 + $0x3f8] sm:$0xff]
    %v203 = vld [vmem:[#allocation2 + $0x400] sm:$0xff]
    %v204 = vld [vmem:[#allocation2 + $0x408] sm:$0xff]
    %v205 = vld [vmem:[#allocation2 + $0x410] sm:$0xff]
    %v206 = vld [vmem:[#allocation2 + $0x418] sm:$0xff]
    %v207 = vld [vmem:[#allocation2 + $0x420] sm:$0xff]
    %v208 = vld [vmem:[#allocation2 + $0x428] sm:$0xff]
    %v209 = vld [vmem:[#allocation2 + $0x430] sm:$0xff]
    %v210 = vld [vmem:[#allocation2 + $0x438] sm:$0xff]
    %v211 = vld [vmem:[#allocation2 + $0x440] sm:$0xff]
    %v212 = vld [vmem:[#allocation2 + $0x448] sm:$0xff]
    %v213 = vld [vmem:[#allocation2 + $0x450] sm:$0xff]
    %v214 = vld [vmem:[#allocation2 + $0x458] sm:$0xff]
    %v215 = vld [vmem:[#allocation2 + $0x460] sm:$0xff]
    %v216 = vld [vmem:[#allocation2 + $0x468] sm:$0xff]
    %v217 = vld [vmem:[#allocation2 + $0x470] sm:$0xff]
    %v218 = vld [vmem:[#allocation2 + $0x478] sm:$0xff]
    %v219 = vld [vmem:[#allocation2 + $0x480] sm:$0xff]
    %v220 = vld [vmem:[#allocation2 + $0x488] sm:$0xff]
    %v221 = vld [vmem:[#allocation2 + $0x490] sm:$0xff]
    %v222 = vld [vmem:[#allocation2 + $0x498] sm:$0xff]
    %v223 = vld [vmem:[#allocation2 + $0x4a0] sm:$0xff]
    %v224 = vld [vmem:[#allocation2 + $0x4a8] sm:$0xff]
    %v225 = vld [vmem:[#allocation2 + $0x4b0] sm:$0xff]
    %v226 = vld [vmem:[#allocation2 + $0x4b8] sm:$0xff]
    %v227 = vld [vmem:[#allocation2 + $0x4c0] sm:$0xff]
    %v228 = vld [vmem:[#allocation2 + $0x4c8] sm:$0xff]
    %v229 = vld [vmem:[#allocation2 + $0x4d0] sm:$0xff]
    %v230 = vld [vmem:[#allocation2 + $0x4d8] sm:$0xff]
    %v231 = vld [vmem:[#allocation2 + $0x4e0] sm:$0xff]
    %v232 = vld [vmem:[#allocation2 + $0x4e8] sm:$0xff]
    %v233 = vld [vmem:[#allocation2 + $0x4f0] sm:$0xff]
    %v234 = vld [vmem:[#allocation2 + $0x4f8] sm:$0xff]
    %v235 = vld [vmem:[#allocation2 + $0x500] sm:$0xff]
    %v236 = vld [vmem:[#allocation2 + $0x508] sm:$0xff]
    %v237 = vld [vmem:[#allocation2 + $0x510] sm:$0xff]
    %v238 = vld [vmem:[#allocation2 + $0x518] sm:$0xff]
    %v239 = vld [vmem:[#allocation2 + $0x520] sm:$0xff]
    %v240 = vld [vmem:[#allocation2 + $0x528] sm:$0xff]
    %v241 = vld [vmem:[#allocation2 + $0x530] sm:$0xff]
    %v242 = vld [vmem:[#allocation2 + $0x538] sm:$0xff]
    %v243 = vld [vmem:[#allocation2 + $0x540] sm:$0xff]
    %v244 = vld [vmem:[#allocation2 + $0x548] sm:$0xff]
    %v245 = vld [vmem:[#allocation2 + $0x550] sm:$0xff]
    %v246 = vld [vmem:[#allocation2 + $0x558] sm:$0xff]
    %v247 = vld [vmem:[#allocation2 + $0x560] sm:$0xff]
    %v248 = vld [vmem:[#allocation2 + $0x568] sm:$0xff]
    %v249 = vld [vmem:[#allocation2 + $0x570] sm:$0xff]
    %v250 = vld [vmem:[#allocation2 + $0x578] sm:$0xff]
    %v251 = vld [vmem:[#allocation2 + $0x580] sm:$0xff]
    %v252 = vld [vmem:[#allocation2 + $0x588] sm:$0xff]
    %v253 = vld [vmem:[#allocation2 + $0x590] sm:$0xff]
    %v254 = vld [vmem:[#allocation2 + $0x598] sm:$0xff]
    %v255 = vld [vmem:[#allocation2 + $0x5a0] sm:$0xff]
    %v256 = vld [vmem:[#allocation2 + $0x5a8] sm:$0xff]
    %v257 = vld [vmem:[#allocation2 + $0x5b0] sm:$0xff]
    %v258 = vld [vmem:[#allocation2 + $0x5b8] sm:$0xff]
    %v259 = vld [vmem:[#allocation2 + $0x5c0] sm:$0xff]
    %v260 = vld [vmem:[#allocation2 + $0x5c8] sm:$0xff]
    %v261 = vld [vmem:[#allocation2 + $0x5d0] sm:$0xff]
    %v262 = vld [vmem:[#allocation2 + $0x5d8] sm:$0xff]
    %v263 = vld [vmem:[#allocation2 + $0x5e0] sm:$0xff]
    %v264 = vld [vmem:[#allocation2 + $0x5e8] sm:$0xff]
    %v265 = vld [vmem:[#allocation2 + $0x5f0] sm:$0xff]
    %v266 = vld [vmem:[#allocation2 + $0x5f8] sm:$0xff]
    %v267 = vld [vmem:[#allocation2 + $0x600] sm:$0xff]
    %v268 = vld [vmem:[#allocation2 + $0x608] sm:$0xff]
    %v269 = vld [vmem:[#allocation2 + $0x610] sm:$0xff]
    %v270 = vld [vmem:[#allocation2 + $0x618] sm:$0xff]
    %v271 = vld [vmem:[#allocation2 + $0x620] sm:$0xff]
    %v272 = vld [vmem:[#allocation2 + $0x628] sm:$0xff]
    %v273 = vld [vmem:[#allocation2 + $0x630] sm:$0xff]
    %v274 = vld [vmem:[#allocation2 + $0x638] sm:$0xff]
    %v275 = vld [vmem:[#allocation2 + $0x640] sm:$0xff]
    %v276 = vld [vmem:[#allocation2 + $0x648] sm:$0xff]
    %v277 = vld [vmem:[#allocation2 + $0x650] sm:$0xff]
    %v278 = vld [vmem:[#allocation2 + $0x658] sm:$0xff]
    %v279 = vld [vmem:[#allocation2 + $0x660] sm:$0xff]
    %v280 = vld [vmem:[#allocation2 + $0x668] sm:$0xff]
    %v281 = vld [vmem:[#allocation2 + $0x670] sm:$0xff]
    %v282 = vld [vmem:[#allocation2 + $0x678] sm:$0xff]
    %v283 = vld [vmem:[#allocation2 + $0x680] sm:$0xff]
    %v284 = vld [vmem:[#allocation2 + $0x688] sm:$0xff]
    %v285 = vld [vmem:[#allocation2 + $0x690] sm:$0xff]
    %v286 = vld [vmem:[#allocation2 + $0x698] sm:$0xff]
    %v287 = vld [vmem:[#allocation2 + $0x6a0] sm:$0xff]
    %v288 = vld [vmem:[#allocation2 + $0x6a8] sm:$0xff]
    %v289 = vld [vmem:[#allocation2 + $0x6b0] sm:$0xff]
    %v290 = vld [vmem:[#allocation2 + $0x6b8] sm:$0xff]
    %v291 = vld [vmem:[#allocation2 + $0x6c0] sm:$0xff]
    %v292 = vld [vmem:[#allocation2 + $0x6c8] sm:$0xff]
    %v293 = vld [vmem:[#allocation2 + $0x6d0] sm:$0xff]
    %v294 = vld [vmem:[#allocation2 + $0x6d8] sm:$0xff]
    %v295 = vld [vmem:[#allocation2 + $0x6e0] sm:$0xff]
    %v296 = vld [vmem:[#allocation2 + $0x6e8] sm:$0xff]
    %v297 = vld [vmem:[#allocation2 + $0x6f0] sm:$0xff]
    %v298 = vld [vmem:[#allocation2 + $0x6f8] sm:$0xff]
    %v299 = vld [vmem:[#allocation2 + $0x700] sm:$0xff]
    %v300 = vld [vmem:[#allocation2 + $0x708] sm:$0xff]
    %v301 = vld [vmem:[#allocation2 + $0x710] sm:$0xff]
    %v302 = vld [vmem:[#allocation2 + $0x718] sm:$0xff]
    %v303 = vld [vmem:[#allocation2 + $0x720] sm:$0xff]
    %v304 = vld [vmem:[#allocation2 + $0x728] sm:$0xff]
    %v305 = vld [vmem:[#allocation2 + $0x730] sm:$0xff]
    %v306 = vld [vmem:[#allocation2 + $0x738] sm:$0xff]
    %v307 = vld [vmem:[#allocation2 + $0x740] sm:$0xff]
    %v308 = vld [vmem:[#allocation2 + $0x748] sm:$0xff]
    %v309 = vld [vmem:[#allocation2 + $0x750] sm:$0xff]
    %v310 = vld [vmem:[#allocation2 + $0x758] sm:$0xff]
    %v311 = vld [vmem:[#allocation2 + $0x760] sm:$0xff]
    %v312 = vld [vmem:[#allocation2 + $0x768] sm:$0xff]
    %v313 = vld [vmem:[#allocation2 + $0x770] sm:$0xff]
    %v314 = vld [vmem:[#allocation2 + $0x778] sm:$0xff]
    %v315 = vld [vmem:[#allocation2 + $0x780] sm:$0xff]
    %v316 = vld [vmem:[#allocation2 + $0x788] sm:$0xff]
    %v317 = vld [vmem:[#allocation2 + $0x790] sm:$0xff]
    %v318 = vld [vmem:[#allocation2 + $0x798] sm:$0xff]
    %v319 = vld [vmem:[#allocation2 + $0x7a0] sm:$0xff]
    %v320 = vld [vmem:[#allocation2 + $0x7a8] sm:$0xff]
    %v321 = vld [vmem:[#allocation2 + $0x7b0] sm:$0xff]
    %v322 = vld [vmem:[#allocation2 + $0x7b8] sm:$0xff]
    %v323 = vld [vmem:[#allocation2 + $0x7c0] sm:$0xff]
    %v324 = vld [vmem:[#allocation2 + $0x7c8] sm:$0xff]
    %v325 = vld [vmem:[#allocation2 + $0x7d0] sm:$0xff]
    %v326 = vld [vmem:[#allocation2 + $0x7d8] sm:$0xff]
    %v327 = vld [vmem:[#allocation2 + $0x7e0] sm:$0xff]
    %v328 = vld [vmem:[#allocation2 + $0x7e8] sm:$0xff]
    %v329 = vld [vmem:[#allocation2 + $0x7f0] sm:$0xff]
    %v330 = vld [vmem:[#allocation2 + $0x7f8] sm:$0xff]
    %v331 = vld [vmem:[#allocation2 + $0x800] sm:$0xff]
    %v332 = vld [vmem:[#allocation2 + $0x808] sm:$0xff]
    %v333 = vld [vmem:[#allocation2 + $0x810] sm:$0xff]
    %v334 = vld [vmem:[#allocation2 + $0x818] sm:$0xff]
    %v335 = vld [vmem:[#allocation2 + $0x820] sm:$0xff]
    %v336 = vld [vmem:[#allocation2 + $0x828] sm:$0xff]
    %v337 = vld [vmem:[#allocation2 + $0x830] sm:$0xff]
    %v338 = vld [vmem:[#allocation2 + $0x838] sm:$0xff]
    %v339 = vld [vmem:[#allocation2 + $0x840] sm:$0xff]
    %v340 = vld [vmem:[#allocation2 + $0x848] sm:$0xff]
    %v341 = vld [vmem:[#allocation2 + $0x850] sm:$0xff]
    %v342 = vld [vmem:[#allocation2 + $0x858] sm:$0xff]
    %v343 = vld [vmem:[#allocation2 + $0x860] sm:$0xff]
    %v344 = vld [vmem:[#allocation2 + $0x868] sm:$0xff]
    %v345 = vld [vmem:[#allocation2 + $0x870] sm:$0xff]
    %v346 = vld [vmem:[#allocation2 + $0x878] sm:$0xff]
    %v347 = vld [vmem:[#allocation2 + $0x880] sm:$0xff]
    %v348 = vld [vmem:[#allocation2 + $0x888] sm:$0xff]
    %v349 = vld [vmem:[#allocation2 + $0x890] sm:$0xff]
    %v350 = vld [vmem:[#allocation2 + $0x898] sm:$0xff]
    %v351 = vld [vmem:[#allocation2 + $0x8a0] sm:$0xff]
    %v352 = vld [vmem:[#allocation2 + $0x8a8] sm:$0xff]
    %v353 = vld [vmem:[#allocation2 + $0x8b0] sm:$0xff]
    %v354 = vld [vmem:[#allocation2 + $0x8b8] sm:$0xff]
    %v355 = vld [vmem:[#allocation2 + $0x8c0] sm:$0xff]
    %v356 = vld [vmem:[#allocation2 + $0x8c8] sm:$0xff]
    %v357 = vld [vmem:[#allocation2 + $0x8d0] sm:$0xff]
    %v358 = vld [vmem:[#allocation2 + $0x8d8] sm:$0xff]
    %v359 = vld [vmem:[#allocation2 + $0x8e0] sm:$0xff]
    %v360 = vld [vmem:[#allocation2 + $0x8e8] sm:$0xff]
    %v361 = vld [vmem:[#allocation2 + $0x8f0] sm:$0xff]
    %v362 = vld [vmem:[#allocation2 + $0x8f8] sm:$0xff]
    %v363 = vld [vmem:[#allocation2 + $0x900] sm:$0xff]
    %v364 = vld [vmem:[#allocation2 + $0x908] sm:$0xff]
    %v365 = vld [vmem:[#allocation2 + $0x910] sm:$0xff]
    %v366 = vld [vmem:[#allocation2 + $0x918] sm:$0xff]
    %v367 = vld [vmem:[#allocation2 + $0x920] sm:$0xff]
    %v368 = vld [vmem:[#allocation2 + $0x928] sm:$0xff]
    %v369 = vld [vmem:[#allocation2 + $0x930] sm:$0xff]
    %v370 = vld [vmem:[#allocation2 + $0x938] sm:$0xff]
    %v371 = vld [vmem:[#allocation2 + $0x940] sm:$0xff]
    %v372 = vld [vmem:[#allocation2 + $0x948] sm:$0xff]
    %v373 = vld [vmem:[#allocation2 + $0x950] sm:$0xff]
    %v374 = vld [vmem:[#allocation2 + $0x958] sm:$0xff]
    %v375 = vld [vmem:[#allocation2 + $0x960] sm:$0xff]
    %v376 = vld [vmem:[#allocation2 + $0x968] sm:$0xff]
    %v377 = vld [vmem:[#allocation2 + $0x970] sm:$0xff]
    %v378 = vld [vmem:[#allocation2 + $0x978] sm:$0xff]
    %v379 = vld [vmem:[#allocation2 + $0x980] sm:$0xff]
    %v380 = vld [vmem:[#allocation2 + $0x988] sm:$0xff]
    %v381 = vld [vmem:[#allocation2 + $0x990] sm:$0xff]
    %v382 = vld [vmem:[#allocation2 + $0x998] sm:$0xff]
    %v383 = vld [vmem:[#allocation2 + $0x9a0] sm:$0xff]
    %v384 = vld [vmem:[#allocation2 + $0x9a8] sm:$0xff]
    %v385 = vld [vmem:[#allocation2 + $0x9b0] sm:$0xff]
    %v386 = vld [vmem:[#allocation2 + $0x9b8] sm:$0xff]
    %v387 = vld [vmem:[#allocation2 + $0x9c0] sm:$0xff]
    %v388 = vld [vmem:[#allocation2 + $0x9c8] sm:$0xff]
    %v389 = vld [vmem:[#allocation2 + $0x9d0] sm:$0xff]
    %v390 = vld [vmem:[#allocation2 + $0x9d8] sm:$0xff]
    %v391 = vld [vmem:[#allocation2 + $0x9e0] sm:$0xff]
    %v392 = vld [vmem:[#allocation2 + $0x9e8] sm:$0xff]
    %v393 = vld [vmem:[#allocation2 + $0x9f0] sm:$0xff]
    %v394 = vld [vmem:[#allocation2 + $0x9f8] sm:$0xff]
    %v395 = vld [vmem:[#allocation2 + $0xa00] sm:$0xff]
    %v396 = vld [vmem:[#allocation2 + $0xa08] sm:$0xff]
    %v397 = vld [vmem:[#allocation2 + $0xa10] sm:$0xff]
    %v398 = vld [vmem:[#allocation2 + $0xa18] sm:$0xff]
    %v399 = vld [vmem:[#allocation2 + $0xa20] sm:$0xff]
    %v400 = vld [vmem:[#allocation2 + $0xa28] sm:$0xff]
    %v401 = vld [vmem:[#allocation2 + $0xa30] sm:$0xff]
    %v402 = vld [vmem:[#allocation2 + $0xa38] sm:$0xff]
    %v403 = vld [vmem:[#allocation2 + $0xa40] sm:$0xff]
    %v404 = vld [vmem:[#allocation2 + $0xa48] sm:$0xff]
    %v405 = vld [vmem:[#allocation2 + $0xa50] sm:$0xff]
    %v406 = vld [vmem:[#allocation2 + $0xa58] sm:$0xff]
    %v407 = vld [vmem:[#allocation2 + $0xa60] sm:$0xff]
    %v408 = vld [vmem:[#allocation2 + $0xa68] sm:$0xff]
    %v409 = vld [vmem:[#allocation2 + $0xa70] sm:$0xff]
    %v410 = vld [vmem:[#allocation2 + $0xa78] sm:$0xff]
    %v411 = vld [vmem:[#allocation2 + $0xa80] sm:$0xff]
    %v412 = vld [vmem:[#allocation2 + $0xa88] sm:$0xff]
    %v413 = vld [vmem:[#allocation2 + $0xa90] sm:$0xff]
    %v414 = vld [vmem:[#allocation2 + $0xa98] sm:$0xff]
    %v415 = vld [vmem:[#allocation2 + $0xaa0] sm:$0xff]
    %v416 = vld [vmem:[#allocation2 + $0xaa8] sm:$0xff]
    %v417 = vld [vmem:[#allocation2 + $0xab0] sm:$0xff]
    %v418 = vld [vmem:[#allocation2 + $0xab8] sm:$0xff]
    %v419 = vld [vmem:[#allocation2 + $0xac0] sm:$0xff]
    %v420 = vld [vmem:[#allocation2 + $0xac8] sm:$0xff]
    %v421 = vld [vmem:[#allocation2 + $0xad0] sm:$0xff]
    %v422 = vld [vmem:[#allocation2 + $0xad8] sm:$0xff]
    %v423 = vld [vmem:[#allocation2 + $0xae0] sm:$0xff]
    %v424 = vld [vmem:[#allocation2 + $0xae8] sm:$0xff]
    %v425 = vld [vmem:[#allocation2 + $0xaf0] sm:$0xff]
    %v426 = vld [vmem:[#allocation2 + $0xaf8] sm:$0xff]
    %v427 = vld [vmem:[#allocation2 + $0xb00] sm:$0xff]
    %v428 = vld [vmem:[#allocation2 + $0xb08] sm:$0xff]
    %v429 = vld [vmem:[#allocation2 + $0xb10] sm:$0xff]
    %v430 = vld [vmem:[#allocation2 + $0xb18] sm:$0xff]
    %v431 = vld [vmem:[#allocation2 + $0xb20] sm:$0xff]
    %v432 = vld [vmem:[#allocation2 + $0xb28] sm:$0xff]
    %v433 = vld [vmem:[#allocation2 + $0xb30] sm:$0xff]
    %v434 = vld [vmem:[#allocation2 + $0xb38] sm:$0xff]
    %v435 = vld [vmem:[#allocation2 + $0xb40] sm:$0xff]
    %v436 = vld [vmem:[#allocation2 + $0xb48] sm:$0xff]
    %v437 = vld [vmem:[#allocation2 + $0xb50] sm:$0xff]
    %v438 = vld [vmem:[#allocation2 + $0xb58] sm:$0xff]
    %v439 = vld [vmem:[#allocation2 + $0xb60] sm:$0xff]
    %v440 = vld [vmem:[#allocation2 + $0xb68] sm:$0xff]
    %v441 = vld [vmem:[#allocation2 + $0xb70] sm:$0xff]
    %v442 = vld [vmem:[#allocation2 + $0xb78] sm:$0xff]
    %v443 = vld [vmem:[#allocation2 + $0xb80] sm:$0xff]
    %v444 = vld [vmem:[#allocation2 + $0xb88] sm:$0xff]
    %v445 = vld [vmem:[#allocation2 + $0xb90] sm:$0xff]
    %v446 = vld [vmem:[#allocation2 + $0xb98] sm:$0xff]
    %v447 = vld [vmem:[#allocation2 + $0xba0] sm:$0xff]
    %v448 = vld [vmem:[#allocation2 + $0xba8] sm:$0xff]
    %v449 = vld [vmem:[#allocation2 + $0xbb0] sm:$0xff]
    %v450 = vld [vmem:[#allocation2 + $0xbb8] sm:$0xff]
    %v451 = vld [vmem:[#allocation2 + $0xbc0] sm:$0xff]
    %v452 = vld [vmem:[#allocation2 + $0xbc8] sm:$0xff]
    %v453 = vld [vmem:[#allocation2 + $0xbd0] sm:$0xff]
    %v454 = vld [vmem:[#allocation2 + $0xbd8] sm:$0xff]
    %v455 = vld [vmem:[#allocation2 + $0xbe0] sm:$0xff]
    %v456 = vld [vmem:[#allocation2 + $0xbe8] sm:$0xff]
    %v457 = vld [vmem:[#allocation2 + $0xbf0] sm:$0xff]
    %v458 = vld [vmem:[#allocation2 + $0xbf8] sm:$0xff]
    %v459 = vld [vmem:[#allocation2 + $0xc00] sm:$0xff]
    %v460 = vld [vmem:[#allocation2 + $0xc08] sm:$0xff]
    %v461 = vld [vmem:[#allocation2 + $0xc10] sm:$0xff]
    %v462 = vld [vmem:[#allocation2 + $0xc18] sm:$0xff]
    %v463 = vld [vmem:[#allocation2 + $0xc20] sm:$0xff]
    %v464 = vld [vmem:[#allocation2 + $0xc28] sm:$0xff]
    %v465 = vld [vmem:[#allocation2 + $0xc30] sm:$0xff]
    %v466 = vld [vmem:[#allocation2 + $0xc38] sm:$0xff]
    %v467 = vld [vmem:[#allocation2 + $0xc40] sm:$0xff]
    %v468 = vld [vmem:[#allocation2 + $0xc48] sm:$0xff]
    %v469 = vld [vmem:[#allocation2 + $0xc50] sm:$0xff]
    %v470 = vld [vmem:[#allocation2 + $0xc58] sm:$0xff]
    %v471 = vld [vmem:[#allocation2 + $0xc60] sm:$0xff]
    %v472 = vld [vmem:[#allocation2 + $0xc68] sm:$0xff]
    %v473 = vld [vmem:[#allocation2 + $0xc70] sm:$0xff]
    %v474 = vld [vmem:[#allocation2 + $0xc78] sm:$0xff]
    %v475 = vld [vmem:[#allocation2 + $0xc80] sm:$0xff]
    %v476 = vld [vmem:[#allocation2 + $0xc88] sm:$0xff]
    %v477 = vld [vmem:[#allocation2 + $0xc90] sm:$0xff]
    %v478 = vld [vmem:[#allocation2 + $0xc98] sm:$0xff]
    %v479 = vld [vmem:[#allocation2 + $0xca0] sm:$0xff]
    %v480 = vld [vmem:[#allocation2 + $0xca8] sm:$0xff]
    %v481 = vld [vmem:[#allocation2 + $0xcb0] sm:$0xff]
    %v482 = vld [vmem:[#allocation2 + $0xcb8] sm:$0xff]
    %v483 = vld [vmem:[#allocation2 + $0xcc0] sm:$0xff]
    %v484 = vld [vmem:[#allocation2 + $0xcc8] sm:$0xff]
    %v485 = vld [vmem:[#allocation2 + $0xcd0] sm:$0xff]
    %v486 = vld [vmem:[#allocation2 + $0xcd8] sm:$0xff]
    %v487 = vld [vmem:[#allocation2 + $0xce0] sm:$0xff]
    %v488 = vld [vmem:[#allocation2 + $0xce8] sm:$0xff]
    %v489 = vld [vmem:[#allocation2 + $0xcf0] sm:$0xff]
    %v490 = vld [vmem:[#allocation2 + $0xcf8] sm:$0xff]
    %v491 = vld [vmem:[#allocation2 + $0xd00] sm:$0xff]
    %v492 = vld [vmem:[#allocation2 + $0xd08] sm:$0xff]
    %v493 = vld [vmem:[#allocation2 + $0xd10] sm:$0xff]
    %v494 = vld [vmem:[#allocation2 + $0xd18] sm:$0xff]
    %v495 = vld [vmem:[#allocation2 + $0xd20] sm:$0xff]
    %v496 = vld [vmem:[#allocation2 + $0xd28] sm:$0xff]
    %v497 = vld [vmem:[#allocation2 + $0xd30] sm:$0xff]
    %v498 = vld [vmem:[#allocation2 + $0xd38] sm:$0xff]
    %v499 = vld [vmem:[#allocation2 + $0xd40] sm:$0xff]
    %v500 = vld [vmem:[#allocation2 + $0xd48] sm:$0xff]
    %v501 = vld [vmem:[#allocation2 + $0xd50] sm:$0xff]
    %v502 = vld [vmem:[#allocation2 + $0xd58] sm:$0xff]
    %v503 = vld [vmem:[#allocation2 + $0xd60] sm:$0xff]
    %v504 = vld [vmem:[#allocation2 + $0xd68] sm:$0xff]
    %v505 = vld [vmem:[#allocation2 + $0xd70] sm:$0xff]
    %v506 = vld [vmem:[#allocation2 + $0xd78] sm:$0xff]
    %v507 = vld [vmem:[#allocation2 + $0xd80] sm:$0xff]
    %v508 = vld [vmem:[#allocation2 + $0xd88] sm:$0xff]
    %v509 = vld [vmem:[#allocation2 + $0xd90] sm:$0xff]
    %v510 = vld [vmem:[#allocation2 + $0xd98] sm:$0xff]
    %v511 = vld [vmem:[#allocation2 + $0xda0] sm:$0xff]
    %v512 = vld [vmem:[#allocation2 + $0xda8] sm:$0xff]
    %v513 = vld [vmem:[#allocation2 + $0xdb0] sm:$0xff]
    %v514 = vld [vmem:[#allocation2 + $0xdb8] sm:$0xff]
    %v515 = vld [vmem:[#allocation2 + $0xdc0] sm:$0xff]
    %v516 = vld [vmem:[#allocation2 + $0xdc8] sm:$0xff]
    %v517 = vld [vmem:[#allocation2 + $0xdd0] sm:$0xff]
    %v518 = vld [vmem:[#allocation2 + $0xdd8] sm:$0xff]
    %v519 = vld [vmem:[#allocation2 + $0xde0] sm:$0xff]
    %v520 = vld [vmem:[#allocation2 + $0xde8] sm:$0xff]
    %v521 = vld [vmem:[#allocation2 + $0xdf0] sm:$0xff]
    %v522 = vld [vmem:[#allocation2 + $0xdf8] sm:$0xff]
    %v523 = vld [vmem:[#allocation2 + $0xe00] sm:$0xff]
    %v524 = vld [vmem:[#allocation2 + $0xe08] sm:$0xff]
    %v525 = vld [vmem:[#allocation2 + $0xe10] sm:$0xff]
    %v526 = vld [vmem:[#allocation2 + $0xe18] sm:$0xff]
    %v527 = vld [vmem:[#allocation2 + $0xe20] sm:$0xff]
    %v528 = vld [vmem:[#allocation2 + $0xe28] sm:$0xff]
    %v529 = vld [vmem:[#allocation2 + $0xe30] sm:$0xff]
    %v530 = vld [vmem:[#allocation2 + $0xe38] sm:$0xff]
    %v531 = vld [vmem:[#allocation2 + $0xe40] sm:$0xff]
    %v532 = vld [vmem:[#allocation2 + $0xe48] sm:$0xff]
    %v533 = vld [vmem:[#allocation2 + $0xe50] sm:$0xff]
    %v534 = vld [vmem:[#allocation2 + $0xe58] sm:$0xff]
    %v535 = vld [vmem:[#allocation2 + $0xe60] sm:$0xff]
    %v536 = vld [vmem:[#allocation2 + $0xe68] sm:$0xff]
    %v537 = vld [vmem:[#allocation2 + $0xe70] sm:$0xff]
    %v538 = vld [vmem:[#allocation2 + $0xe78] sm:$0xff]
    %v539 = vld [vmem:[#allocation2 + $0xe80] sm:$0xff]
    %v540 = vld [vmem:[#allocation2 + $0xe88] sm:$0xff]
    %v541 = vld [vmem:[#allocation2 + $0xe90] sm:$0xff]
    %v542 = vld [vmem:[#allocation2 + $0xe98] sm:$0xff]
    %v543 = vld [vmem:[#allocation2 + $0xea0] sm:$0xff]
    %v544 = vld [vmem:[#allocation2 + $0xea8] sm:$0xff]
    %v545 = vld [vmem:[#allocation2 + $0xeb0] sm:$0xff]
    %v546 = vld [vmem:[#allocation2 + $0xeb8] sm:$0xff]
    %v547 = vld [vmem:[#allocation2 + $0xec0] sm:$0xff]
    %v548 = vld [vmem:[#allocation2 + $0xec8] sm:$0xff]
    %v549 = vld [vmem:[#allocation2 + $0xed0] sm:$0xff]
    %v550 = vld [vmem:[#allocation2 + $0xed8] sm:$0xff]
    %v551 = vld [vmem:[#allocation2 + $0xee0] sm:$0xff]
    %v552 = vld [vmem:[#allocation2 + $0xee8] sm:$0xff]
    %v553 = vld [vmem:[#allocation2 + $0xef0] sm:$0xff]
    %v554 = vld [vmem:[#allocation2 + $0xef8] sm:$0xff]
    %v555 = vld [vmem:[#allocation2 + $0xf00] sm:$0xff]
    %v556 = vld [vmem:[#allocation2 + $0xf08] sm:$0xff]
    %v557 = vld [vmem:[#allocation2 + $0xf10] sm:$0xff]
    %v558 = vld [vmem:[#allocation2 + $0xf18] sm:$0xff]
    %v559 = vld [vmem:[#allocation2 + $0xf20] sm:$0xff]
    %v560 = vld [vmem:[#allocation2 + $0xf28] sm:$0xff]
    %v561 = vld [vmem:[#allocation2 + $0xf30] sm:$0xff]
    %v562 = vld [vmem:[#allocation2 + $0xf38] sm:$0xff]
    %v563 = vld [vmem:[#allocation2 + $0xf40] sm:$0xff]
    %v564 = vld [vmem:[#allocation2 + $0xf48] sm:$0xff]
    %v565 = vld [vmem:[#allocation2 + $0xf50] sm:$0xff]
    %v566 = vld [vmem:[#allocation2 + $0xf58] sm:$0xff]
    %v567 = vld [vmem:[#allocation2 + $0xf60] sm:$0xff]
    %v568 = vld [vmem:[#allocation2 + $0xf68] sm:$0xff]
    %v569 = vld [vmem:[#allocation2 + $0xf70] sm:$0xff]
    %v570 = vld [vmem:[#allocation2 + $0xf78] sm:$0xff]
    %v571 = vld [vmem:[#allocation2 + $0xf80] sm:$0xff]
    %v572 = vld [vmem:[#allocation2 + $0xf88] sm:$0xff]
    %v573 = vld [vmem:[#allocation2 + $0xf90] sm:$0xff]
    %v574 = vld [vmem:[#allocation2 + $0xf98] sm:$0xff]
    %v575 = vld [vmem:[#allocation2 + $0xfa0] sm:$0xff]
    %v576 = vld [vmem:[#allocation2 + $0xfa8] sm:$0xff]
    %v577 = vld [vmem:[#allocation2 + $0xfb0] sm:$0xff]
    %v578 = vld [vmem:[#allocation2 + $0xfb8] sm:$0xff]
    %v579 = vld [vmem:[#allocation2 + $0xfc0] sm:$0xff]
    %v580 = vld [vmem:[#allocation2 + $0xfc8] sm:$0xff]
    %v581 = vld [vmem:[#allocation2 + $0xfd0] sm:$0xff]
    %v582 = vld [vmem:[#allocation2 + $0xfd8] sm:$0xff]
    %v583 = vld [vmem:[#allocation2 + $0xfe0] sm:$0xff]
    %v584 = vld [vmem:[#allocation2 + $0xfe8] sm:$0xff]
    %v585 = vld [vmem:[#allocation2 + $0xff0] sm:$0xff]
    %v586 = vld [vmem:[#allocation2 + $0xff8] sm:$0xff]
    %587 = vmatprep.subr.mxu0 %v76
    %588 = vmatpush1.msra.mxu0 %v75
    %589 = vmatprep.subr.mxu0 %v108
    %590 = vmatpush1.msra.mxu0 %v107
    %591 = vmatprep.subr.mxu0 %v140
    %592 = vmatpush1.msra.mxu0 %v139
    %593 = vmatprep.subr.mxu0 %v172
    %594 = vmatpush1.msra.mxu0 %v171
    %595 = vmatprep.subr.mxu0 %v204
    %596 = vmatpush1.msra.mxu0 %v203
    %597 = vmatprep.subr.mxu0 %v236
    %598 = vmatpush1.msra.mxu0 %v235
    %599 = vmatprep.subr.mxu0 %v268
    %600 = vmatpush1.msra.mxu0 %v267
    %601 = vmatprep.subr.mxu0 %v300
    %602 = vmatpush1.msra.mxu0 %v299
    %603 = vmatprep.subr.mxu0 %v332
    %604 = vmatpush1.msra.mxu0 %v331
    %605 = vmatprep.subr.mxu0 %v364
    %606 = vmatpush1.msra.mxu0 %v363
    %607 = vmatprep.subr.mxu0 %v396
    %608 = vmatpush1.msra.mxu0 %v395
    %609 = vmatprep.subr.mxu0 %v428
    %610 = vmatpush1.msra.mxu0 %v427
    %611 = vmatprep.subr.mxu0 %v460
    %612 = vmatpush1.msra.mxu0 %v459
    %613 = vmatprep.subr.mxu0 %v492
    %614 = vmatpush1.msra.mxu0 %v491
    %615 = vmatprep.subr.mxu0 %v524
    %616 = vmatpush1.msra.mxu0 %v523
    %617 = vmatprep.subr.mxu0 %v556
    %618 = vmatpush1.msra.mxu0 %v555
    %619 = vmatprep.subr.mxu0 0.0
    %620 = vmatpush1.msra.mxu0 0.0
    %621 = vmatprep.subr.mxu0 0.0
    %622 = vmatpush1.msra.mxu0 0.0
    %623 = vmatprep.subr.mxu0 0.0
    %624 = vmatpush1.msra.mxu0 0.0
    %625 = vmatprep.subr.mxu0 0.0
    %626 = vmatpush1.msra.mxu0 0.0
    %627 = vmatprep.subr.mxu0 0.0
    %628 = vmatpush1.msra.mxu0 0.0
    %629 = vmatprep.subr.mxu0 0.0
    %630 = vmatpush1.msra.mxu0 0.0
    %631 = vmatprep.subr.mxu0 0.0
    %632 = vmatpush1.msra.mxu0 0.0
    %633 = vmatprep.subr.mxu0 0.0
    %634 = vmatpush1.msra.mxu0 0.0
    %635 = vmatprep.subr.mxu0 0.0
    %636 = vmatpush1.msra.mxu0 0.0
    %637 = vmatprep.subr.mxu0 0.0
    %638 = vmatpush1.msra.mxu0 0.0
    %639 = vmatprep.subr.mxu0 0.0
    %640 = vmatpush1.msra.mxu0 0.0
    %641 = vmatprep.subr.mxu0 0.0
    %642 = vmatpush1.msra.mxu0 0.0
    %643 = vmatprep.subr.mxu0 0.0
    %644 = vmatpush1.msra.mxu0 0.0
    %645 = vmatprep.subr.mxu0 0.0
    %646 = vmatpush1.msra.mxu0 0.0
    %647 = vmatprep.subr.mxu0 0.0
    %648 = vmatpush1.msra.mxu0 0.0
    %649 = vmatprep.subr.mxu0 0.0
    %650 = vmatpush1.msra.mxu0 0.0
    %651 = vmatprep.mubr.f32.mxu0 0.0
    %652 = vmatmul.mubr.f32.gmra.mrb[0].mxu0 %v74
    %v653 = vpop.f32.mrb[0].mxu0
    %v654 = vadd.f32 0.0, %v653
    %v655 = vpop.f32.mrb[0].mxu0
    %v656 = vadd.f32 0.0, %v655
    %657 = vdwg.mxu0
    %658 = vmatprep.subr.mxu0 %v78
    %659 = vmatpush1.msra.mxu0 %v77
    %660 = vmatprep.subr.mxu0 %v110
    %661 = vmatpush1.msra.mxu0 %v109
    %662 = vmatprep.subr.mxu0 %v142
    %663 = vmatpush1.msra.mxu0 %v141
    %664 = vmatprep.subr.mxu0 %v174
    %665 = vmatpush1.msra.mxu0 %v173
    %666 = vmatprep.subr.mxu0 %v206
    %667 = vmatpush1.msra.mxu0 %v205
    %668 = vmatprep.subr.mxu0 %v238
    %669 = vmatpush1.msra.mxu0 %v237
    %670 = vmatprep.subr.mxu0 %v270
    %671 = vmatpush1.msra.mxu0 %v269
    %672 = vmatprep.subr.mxu0 %v302
    %673 = vmatpush1.msra.mxu0 %v301
    %674 = vmatprep.subr.mxu0 %v334
    %675 = vmatpush1.msra.mxu0 %v333
    %676 = vmatprep.subr.mxu0 %v366
    %677 = vmatpush1.msra.mxu0 %v365
    %678 = vmatprep.subr.mxu0 %v398
    %679 = vmatpush1.msra.mxu0 %v397
    %680 = vmatprep.subr.mxu0 %v430
    %681 = vmatpush1.msra.mxu0 %v429
    %682 = vmatprep.subr.mxu0 %v462
    %683 = vmatpush1.msra.mxu0 %v461
    %684 = vmatprep.subr.mxu0 %v494
    %685 = vmatpush1.msra.mxu0 %v493
    %686 = vmatprep.subr.mxu0 %v526
    %687 = vmatpush1.msra.mxu0 %v525
    %688 = vmatprep.subr.mxu0 %v558
    %689 = vmatpush1.msra.mxu0 %v557
    %690 = vmatprep.subr.mxu0 0.0
    %691 = vmatpush1.msra.mxu0 0.0
    %692 = vmatprep.subr.mxu0 0.0
    %693 = vmatpush1.msra.mxu0 0.0
    %694 = vmatprep.subr.mxu0 0.0
    %695 = vmatpush1.msra.mxu0 0.0
    %696 = vmatprep.subr.mxu0 0.0
    %697 = vmatpush1.msra.mxu0 0.0
    %698 = vmatprep.subr.mxu0 0.0
    %699 = vmatpush1.msra.mxu0 0.0
    %700 = vmatprep.subr.mxu0 0.0
    %701 = vmatpush1.msra.mxu0 0.0
    %702 = vmatprep.subr.mxu0 0.0
    %703 = vmatpush1.msra.mxu0 0.0
    %704 = vmatprep.subr.mxu0 0.0
    %705 = vmatpush1.msra.mxu0 0.0
    %706 = vmatprep.subr.mxu0 0.0
    %707 = vmatpush1.msra.mxu0 0.0
    %708 = vmatprep.subr.mxu0 0.0
    %709 = vmatpush1.msra.mxu0 0.0
    %710 = vmatprep.subr.mxu0 0.0
    %711 = vmatpush1.msra.mxu0 0.0
    %712 = vmatprep.subr.mxu0 0.0
    %713 = vmatpush1.msra.mxu0 0.0
    %714 = vmatprep.subr.mxu0 0.0
    %715 = vmatpush1.msra.mxu0 0.0
    %716 = vmatprep.subr.mxu0 0.0
    %717 = vmatpush1.msra.mxu0 0.0
    %718 = vmatprep.subr.mxu0 0.0
    %719 = vmatpush1.msra.mxu0 0.0
    %720 = vmatprep.subr.mxu0 0.0
    %721 = vmatpush1.msra.mxu0 0.0
    %722 = vmatprep.mubr.f32.mxu0 0.0
    %723 = vmatmul.mubr.f32.gmra.mrb[0].mxu0 %v74
    %v724 = vpop.f32.mrb[0].mxu0
    %v725 = vadd.f32 0.0, %v724
    %v726 = vpop.f32.mrb[0].mxu0
    %v727 = vadd.f32 0.0, %v726
    %728 = vdwg.mxu0
    %729 = vmatprep.subr.mxu0 %v80
    %730 = vmatpush1.msra.mxu0 %v79
    %731 = vmatprep.subr.mxu0 %v112
    %732 = vmatpush1.msra.mxu0 %v111
    %733 = vmatprep.subr.mxu0 %v144
    %734 = vmatpush1.msra.mxu0 %v143
    %735 = vmatprep.subr.mxu0 %v176
    %736 = vmatpush1.msra.mxu0 %v175
    %737 = vmatprep.subr.mxu0 %v208
    %738 = vmatpush1.msra.mxu0 %v207
    %739 = vmatprep.subr.mxu0 %v240
    %740 = vmatpush1.msra.mxu0 %v239
    %741 = vmatprep.subr.mxu0 %v272
    %742 = vmatpush1.msra.mxu0 %v271
    %743 = vmatprep.subr.mxu0 %v304
    %744 = vmatpush1.msra.mxu0 %v303
    %745 = vmatprep.subr.mxu0 %v336
    %746 = vmatpush1.msra.mxu0 %v335
    %747 = vmatprep.subr.mxu0 %v368
    %748 = vmatpush1.msra.mxu0 %v367
    %749 = vmatprep.subr.mxu0 %v400
    %750 = vmatpush1.msra.mxu0 %v399
    %751 = vmatprep.subr.mxu0 %v432
    %752 = vmatpush1.msra.mxu0 %v431
    %753 = vmatprep.subr.mxu0 %v464
    %754 = vmatpush1.msra.mxu0 %v463
    %755 = vmatprep.subr.mxu0 %v496
    %756 = vmatpush1.msra.mxu0 %v495
    %757 = vmatprep.subr.mxu0 %v528
    %758 = vmatpush1.msra.mxu0 %v527
    %759 = vmatprep.subr.mxu0 %v560
    %760 = vmatpush1.msra.mxu0 %v559
    %761 = vmatprep.subr.mxu0 0.0
    %762 = vmatpush1.msra.mxu0 0.0
    %763 = vmatprep.subr.mxu0 0.0
    %764 = vmatpush1.msra.mxu0 0.0
    %765 = vmatprep.subr.mxu0 0.0
    %766 = vmatpush1.msra.mxu0 0.0
    %767 = vmatprep.subr.mxu0 0.0
    %768 = vmatpush1.msra.mxu0 0.0
    %769 = vmatprep.subr.mxu0 0.0
    %770 = vmatpush1.msra.mxu0 0.0
    %771 = vmatprep.subr.mxu0 0.0
    %772 = vmatpush1.msra.mxu0 0.0
    %773 = vmatprep.subr.mxu0 0.0
    %774 = vmatpush1.msra.mxu0 0.0
    %775 = vmatprep.subr.mxu0 0.0
    %776 = vmatpush1.msra.mxu0 0.0
    %777 = vmatprep.subr.mxu0 0.0
    %778 = vmatpush1.msra.mxu0 0.0
    %779 = vmatprep.subr.mxu0 0.0
    %780 = vmatpush1.msra.mxu0 0.0
    %781 = vmatprep.subr.mxu0 0.0
    %782 = vmatpush1.msra.mxu0 0.0
    %783 = vmatprep.subr.mxu0 0.0
    %784 = vmatpush1.msra.mxu0 0.0
    %785 = vmatprep.subr.mxu0 0.0
    %786 = vmatpush1.msra.mxu0 0.0
    %787 = vmatprep.subr.mxu0 0.0
    %788 = vmatpush1.msra.mxu0 0.0
    %789 = vmatprep.subr.mxu0 0.0
    %790 = vmatpush1.msra.mxu0 0.0
    %791 = vmatprep.subr.mxu0 0.0
    %792 = vmatpush1.msra.mxu0 0.0
    %793 = vmatprep.mubr.f32.mxu0 0.0
    %794 = vmatmul.mubr.f32.gmra.mrb[0].mxu0 %v74
    %v795 = vpop.f32.mrb[0].mxu0
    %v796 = vadd.f32 0.0, %v795
    %v797 = vpop.f32.mrb[0].mxu0
    %v798 = vadd.f32 0.0, %v797
    %799 = vdwg.mxu0
    %800 = vmatprep.subr.mxu0 %v82
    %801 = vmatpush1.msra.mxu0 %v81
    %802 = vmatprep.subr.mxu0 %v114
    %803 = vmatpush1.msra.mxu0 %v113
    %804 = vmatprep.subr.mxu0 %v146
    %805 = vmatpush1.msra.mxu0 %v145
    %806 = vmatprep.subr.mxu0 %v178
    %807 = vmatpush1.msra.mxu0 %v177
    %808 = vmatprep.subr.mxu0 %v210
    %809 = vmatpush1.msra.mxu0 %v209
    %810 = vmatprep.subr.mxu0 %v242
    %811 = vmatpush1.msra.mxu0 %v241
    %812 = vmatprep.subr.mxu0 %v274
    %813 = vmatpush1.msra.mxu0 %v273
    %814 = vmatprep.subr.mxu0 %v306
    %815 = vmatpush1.msra.mxu0 %v305
    %816 = vmatprep.subr.mxu0 %v338
    %817 = vmatpush1.msra.mxu0 %v337
    %818 = vmatprep.subr.mxu0 %v370
    %819 = vmatpush1.msra.mxu0 %v369
    %820 = vmatprep.subr.mxu0 %v402
    %821 = vmatpush1.msra.mxu0 %v401
    %822 = vmatprep.subr.mxu0 %v434
    %823 = vmatpush1.msra.mxu0 %v433
    %824 = vmatprep.subr.mxu0 %v466
    %825 = vmatpush1.msra.mxu0 %v465
    %826 = vmatprep.subr.mxu0 %v498
    %827 = vmatpush1.msra.mxu0 %v497
    %828 = vmatprep.subr.mxu0 %v530
    %829 = vmatpush1.msra.mxu0 %v529
    %830 = vmatprep.subr.mxu0 %v562
    %831 = vmatpush1.msra.mxu0 %v561
    %832 = vmatprep.subr.mxu0 0.0
    %833 = vmatpush1.msra.mxu0 0.0
    %834 = vmatprep.subr.mxu0 0.0
    %835 = vmatpush1.msra.mxu0 0.0
    %836 = vmatprep.subr.mxu0 0.0
    %837 = vmatpush1.msra.mxu0 0.0
    %838 = vmatprep.subr.mxu0 0.0
    %839 = vmatpush1.msra.mxu0 0.0
    %840 = vmatprep.subr.mxu0 0.0
    %841 = vmatpush1.msra.mxu0 0.0
    %842 = vmatprep.subr.mxu0 0.0
    %843 = vmatpush1.msra.mxu0 0.0
    %844 = vmatprep.subr.mxu0 0.0
    %845 = vmatpush1.msra.mxu0 0.0
    %846 = vmatprep.subr.mxu0 0.0
    %847 = vmatpush1.msra.mxu0 0.0
    %848 = vmatprep.subr.mxu0 0.0
    %849 = vmatpush1.msra.mxu0 0.0
    %850 = vmatprep.subr.mxu0 0.0
    %851 = vmatpush1.msra.mxu0 0.0
    %852 = vmatprep.subr.mxu0 0.0
    %853 = vmatpush1.msra.mxu0 0.0
    %854 = vmatprep.subr.mxu0 0.0
    %855 = vmatpush1.msra.mxu0 0.0
    %856 = vmatprep.subr.mxu0 0.0
    %857 = vmatpush1.msra.mxu0 0.0
    %858 = vmatprep.subr.mxu0 0.0
    %859 = vmatpush1.msra.mxu0 0.0
    %860 = vmatprep.subr.mxu0 0.0
    %861 = vmatpush1.msra.mxu0 0.0
    %862 = vmatprep.subr.mxu0 0.0
    %863 = vmatpush1.msra.mxu0 0.0
    %864 = vmatprep.mubr.f32.mxu0 0.0
    %865 = vmatmul.mubr.f32.gmra.mrb[0].mxu0 %v74
    %v866 = vpop.f32.mrb[0].mxu0
    %v867 = vadd.f32 0.0, %v866
    %v868 = vpop.f32.mrb[0].mxu0
    %v869 = vadd.f32 0.0, %v868
    %870 = vdwg.mxu0
    %871 = vmatprep.subr.mxu0 %v84
    %872 = vmatpush1.msra.mxu0 %v83
    %873 = vmatprep.subr.mxu0 %v116
    %874 = vmatpush1.msra.mxu0 %v115
    %875 = vmatprep.subr.mxu0 %v148
    %876 = vmatpush1.msra.mxu0 %v147
    %877 = vmatprep.subr.mxu0 %v180
    %878 = vmatpush1.msra.mxu0 %v179
    %879 = vmatprep.subr.mxu0 %v212
    %880 = vmatpush1.msra.mxu0 %v211
    %881 = vmatprep.subr.mxu0 %v244
    %882 = vmatpush1.msra.mxu0 %v243
    %883 = vmatprep.subr.mxu0 %v276
    %884 = vmatpush1.msra.mxu0 %v275
    %885 = vmatprep.subr.mxu0 %v308
    %886 = vmatpush1.msra.mxu0 %v307
    %887 = vmatprep.subr.mxu0 %v340
    %888 = vmatpush1.msra.mxu0 %v339
    %889 = vmatprep.subr.mxu0 %v372
    %890 = vmatpush1.msra.mxu0 %v371
    %891 = vmatprep.subr.mxu0 %v404
    %892 = vmatpush1.msra.mxu0 %v403
    %893 = vmatprep.subr.mxu0 %v436
    %894 = vmatpush1.msra.mxu0 %v435
    %895 = vmatprep.subr.mxu0 %v468
    %896 = vmatpush1.msra.mxu0 %v467
    %897 = vmatprep.subr.mxu0 %v500
    %898 = vmatpush1.msra.mxu0 %v499
    %899 = vmatprep.subr.mxu0 %v532
    %900 = vmatpush1.msra.mxu0 %v531
    %901 = vmatprep.subr.mxu0 %v564
    %902 = vmatpush1.msra.mxu0 %v563
    %903 = vmatprep.subr.mxu0 0.0
    %904 = vmatpush1.msra.mxu0 0.0
    %905 = vmatprep.subr.mxu0 0.0
    %906 = vmatpush1.msra.mxu0 0.0
    %907 = vmatprep.subr.mxu0 0.0
    %908 = vmatpush1.msra.mxu0 0.0
    %909 = vmatprep.subr.mxu0 0.0
    %910 = vmatpush1.msra.mxu0 0.0
    %911 = vmatprep.subr.mxu0 0.0
    %912 = vmatpush1.msra.mxu0 0.0
    %913 = vmatprep.subr.mxu0 0.0
    %914 = vmatpush1.msra.mxu0 0.0
    %915 = vmatprep.subr.mxu0 0.0
    %916 = vmatpush1.msra.mxu0 0.0
    %917 = vmatprep.subr.mxu0 0.0
    %918 = vmatpush1.msra.mxu0 0.0
    %919 = vmatprep.subr.mxu0 0.0
    %920 = vmatpush1.msra.mxu0 0.0
    %921 = vmatprep.subr.mxu0 0.0
    %922 = vmatpush1.msra.mxu0 0.0
    %923 = vmatprep.subr.mxu0 0.0
    %924 = vmatpush1.msra.mxu0 0.0
    %925 = vmatprep.subr.mxu0 0.0
    %926 = vmatpush1.msra.mxu0 0.0
    %927 = vmatprep.subr.mxu0 0.0
    %928 = vmatpush1.msra.mxu0 0.0
    %929 = vmatprep.subr.mxu0 0.0
    %930 = vmatpush1.msra.mxu0 0.0
    %931 = vmatprep.subr.mxu0 0.0
    %932 = vmatpush1.msra.mxu0 0.0
    %933 = vmatprep.subr.mxu0 0.0
    %934 = vmatpush1.msra.mxu0 0.0
    %935 = vmatprep.mubr.f32.mxu0 0.0
    %936 = vmatmul.mubr.f32.gmra.mrb[0].mxu0 %v74
    %v937 = vpop.f32.mrb[0].mxu0
    %v938 = vadd.f32 0.0, %v937
    %v939 = vpop.f32.mrb[0].mxu0
    %v940 = vadd.f32 0.0, %v939
    %941 = vdwg.mxu0
    %942 = vmatprep.subr.mxu0 %v86
    %943 = vmatpush1.msra.mxu0 %v85
    %944 = vmatprep.subr.mxu0 %v118
    %945 = vmatpush1.msra.mxu0 %v117
    %946 = vmatprep.subr.mxu0 %v150
    %947 = vmatpush1.msra.mxu0 %v149
    %948 = vmatprep.subr.mxu0 %v182
    %949 = vmatpush1.msra.mxu0 %v181
    %950 = vmatprep.subr.mxu0 %v214
    %951 = vmatpush1.msra.mxu0 %v213
    %952 = vmatprep.subr.mxu0 %v246
    %953 = vmatpush1.msra.mxu0 %v245
    %954 = vmatprep.subr.mxu0 %v278
    %955 = vmatpush1.msra.mxu0 %v277
    %956 = vmatprep.subr.mxu0 %v310
    %957 = vmatpush1.msra.mxu0 %v309
    %958 = vmatprep.subr.mxu0 %v342
    %959 = vmatpush1.msra.mxu0 %v341
    %960 = vmatprep.subr.mxu0 %v374
    %961 = vmatpush1.msra.mxu0 %v373
    %962 = vmatprep.subr.mxu0 %v406
    %963 = vmatpush1.msra.mxu0 %v405
    %964 = vmatprep.subr.mxu0 %v438
    %965 = vmatpush1.msra.mxu0 %v437
    %966 = vmatprep.subr.mxu0 %v470
    %967 = vmatpush1.msra.mxu0 %v469
    %968 = vmatprep.subr.mxu0 %v502
    %969 = vmatpush1.msra.mxu0 %v501
    %970 = vmatprep.subr.mxu0 %v534
    %971 = vmatpush1.msra.mxu0 %v533
    %972 = vmatprep.subr.mxu0 %v566
    %973 = vmatpush1.msra.mxu0 %v565
    %974 = vmatprep.subr.mxu0 0.0
    %975 = vmatpush1.msra.mxu0 0.0
    %976 = vmatprep.subr.mxu0 0.0
    %977 = vmatpush1.msra.mxu0 0.0
    %978 = vmatprep.subr.mxu0 0.0
    %979 = vmatpush1.msra.mxu0 0.0
    %980 = vmatprep.subr.mxu0 0.0
    %981 = vmatpush1.msra.mxu0 0.0
    %982 = vmatprep.subr.mxu0 0.0
    %983 = vmatpush1.msra.mxu0 0.0
    %984 = vmatprep.subr.mxu0 0.0
    %985 = vmatpush1.msra.mxu0 0.0
    %986 = vmatprep.subr.mxu0 0.0
    %987 = vmatpush1.msra.mxu0 0.0
    %988 = vmatprep.subr.mxu0 0.0
    %989 = vmatpush1.msra.mxu0 0.0
    %990 = vmatprep.subr.mxu0 0.0
    %991 = vmatpush1.msra.mxu0 0.0
    %992 = vmatprep.subr.mxu0 0.0
    %993 = vmatpush1.msra.mxu0 0.0
    %994 = vmatprep.subr.mxu0 0.0
    %995 = vmatpush1.msra.mxu0 0.0
    %996 = vmatprep.subr.mxu0 0.0
    %997 = vmatpush1.msra.mxu0 0.0
    %998 = vmatprep.subr.mxu0 0.0
    %999 = vmatpush1.msra.mxu0 0.0
    %1000 = vmatprep.subr.mxu0 0.0
    %1001 = vmatpush1.msra.mxu0 0.0
    %1002 = vmatprep.subr.mxu0 0.0
    %1003 = vmatpush1.msra.mxu0 0.0
    %1004 = vmatprep.subr.mxu0 0.0
    %1005 = vmatpush1.msra.mxu0 0.0
    %1006 = vmatprep.mubr.f32.mxu0 0.0
    %1007 = vmatmul.mubr.f32.gmra.mrb[0].mxu0 %v74
    %v1008 = vpop.f32.mrb[0].mxu0
    %v1009 = vadd.f32 0.0, %v1008
    %v1010 = vpop.f32.mrb[0].mxu0
    %v1011 = vadd.f32 0.0, %v1010
    %1012 = vdwg.mxu0
    %1013 = vmatprep.subr.mxu0 %v88
    %1014 = vmatpush1.msra.mxu0 %v87
    %1015 = vmatprep.subr.mxu0 %v120
    %1016 = vmatpush1.msra.mxu0 %v119
    %1017 = vmatprep.subr.mxu0 %v152
    %1018 = vmatpush1.msra.mxu0 %v151
    %1019 = vmatprep.subr.mxu0 %v184
    %1020 = vmatpush1.msra.mxu0 %v183
    %1021 = vmatprep.subr.mxu0 %v216
    %1022 = vmatpush1.msra.mxu0 %v215
    %1023 = vmatprep.subr.mxu0 %v248
    %1024 = vmatpush1.msra.mxu0 %v247
    %1025 = vmatprep.subr.mxu0 %v280
    %1026 = vmatpush1.msra.mxu0 %v279
    %1027 = vmatprep.subr.mxu0 %v312
    %1028 = vmatpush1.msra.mxu0 %v311
    %1029 = vmatprep.subr.mxu0 %v344
    %1030 = vmatpush1.msra.mxu0 %v343
    %1031 = vmatprep.subr.mxu0 %v376
    %1032 = vmatpush1.msra.mxu0 %v375
    %1033 = vmatprep.subr.mxu0 %v408
    %1034 = vmatpush1.msra.mxu0 %v407
    %1035 = vmatprep.subr.mxu0 %v440
    %1036 = vmatpush1.msra.mxu0 %v439
    %1037 = vmatprep.subr.mxu0 %v472
    %1038 = vmatpush1.msra.mxu0 %v471
    %1039 = vmatprep.subr.mxu0 %v504
    %1040 = vmatpush1.msra.mxu0 %v503
    %1041 = vmatprep.subr.mxu0 %v536
    %1042 = vmatpush1.msra.mxu0 %v535
    %1043 = vmatprep.subr.mxu0 %v568
    %1044 = vmatpush1.msra.mxu0 %v567
    %1045 = vmatprep.subr.mxu0 0.0
    %1046 = vmatpush1.msra.mxu0 0.0
    %1047 = vmatprep.subr.mxu0 0.0
    %1048 = vmatpush1.msra.mxu0 0.0
    %1049 = vmatprep.subr.mxu0 0.0
    %1050 = vmatpush1.msra.mxu0 0.0
    %1051 = vmatprep.subr.mxu0 0.0
    %1052 = vmatpush1.msra.mxu0 0.0
    %1053 = vmatprep.subr.mxu0 0.0
    %1054 = vmatpush1.msra.mxu0 0.0
    %1055 = vmatprep.subr.mxu0 0.0
    %1056 = vmatpush1.msra.mxu0 0.0
    %1057 = vmatprep.subr.mxu0 0.0
    %1058 = vmatpush1.msra.mxu0 0.0
    %1059 = vmatprep.subr.mxu0 0.0
    %1060 = vmatpush1.msra.mxu0 0.0
    %1061 = vmatprep.subr.mxu0 0.0
    %1062 = vmatpush1.msra.mxu0 0.0
    %1063 = vmatprep.subr.mxu0 0.0
    %1064 = vmatpush1.msra.mxu0 0.0
    %1065 = vmatprep.subr.mxu0 0.0
    %1066 = vmatpush1.msra.mxu0 0.0
    %1067 = vmatprep.subr.mxu0 0.0
    %1068 = vmatpush1.msra.mxu0 0.0
    %1069 = vmatprep.subr.mxu0 0.0
    %1070 = vmatpush1.msra.mxu0 0.0
    %1071 = vmatprep.subr.mxu0 0.0
    %1072 = vmatpush1.msra.mxu0 0.0
    %1073 = vmatprep.subr.mxu0 0.0
    %1074 = vmatpush1.msra.mxu0 0.0
    %1075 = vmatprep.subr.mxu0 0.0
    %1076 = vmatpush1.msra.mxu0 0.0
    %1077 = vmatprep.mubr.f32.mxu0 0.0
    %1078 = vmatmul.mubr.f32.gmra.mrb[0].mxu0 %v74
    %v1079 = vpop.f32.mrb[0].mxu0
    %v1080 = vadd.f32 0.0, %v1079
    %v1081 = vpop.f32.mrb[0].mxu0
    %v1082 = vadd.f32 0.0, %v1081
    %1083 = vdwg.mxu0
    %1084 = vmatprep.subr.mxu0 %v90
    %1085 = vmatpush1.msra.mxu0 %v89
    %1086 = vmatprep.subr.mxu0 %v122
    %1087 = vmatpush1.msra.mxu0 %v121
    %1088 = vmatprep.subr.mxu0 %v154
    %1089 = vmatpush1.msra.mxu0 %v153
    %1090 = vmatprep.subr.mxu0 %v186
    %1091 = vmatpush1.msra.mxu0 %v185
    %1092 = vmatprep.subr.mxu0 %v218
    %1093 = vmatpush1.msra.mxu0 %v217
    %1094 = vmatprep.subr.mxu0 %v250
    %1095 = vmatpush1.msra.mxu0 %v249
    %1096 = vmatprep.subr.mxu0 %v282
    %1097 = vmatpush1.msra.mxu0 %v281
    %1098 = vmatprep.subr.mxu0 %v314
    %1099 = vmatpush1.msra.mxu0 %v313
    %1100 = vmatprep.subr.mxu0 %v346
    %1101 = vmatpush1.msra.mxu0 %v345
    %1102 = vmatprep.subr.mxu0 %v378
    %1103 = vmatpush1.msra.mxu0 %v377
    %1104 = vmatprep.subr.mxu0 %v410
    %1105 = vmatpush1.msra.mxu0 %v409
    %1106 = vmatprep.subr.mxu0 %v442
    %1107 = vmatpush1.msra.mxu0 %v441
    %1108 = vmatprep.subr.mxu0 %v474
    %1109 = vmatpush1.msra.mxu0 %v473
    %1110 = vmatprep.subr.mxu0 %v506
    %1111 = vmatpush1.msra.mxu0 %v505
    %1112 = vmatprep.subr.mxu0 %v538
    %1113 = vmatpush1.msra.mxu0 %v537
    %1114 = vmatprep.subr.mxu0 %v570
    %1115 = vmatpush1.msra.mxu0 %v569
    %1116 = vmatprep.subr.mxu0 0.0
    %1117 = vmatpush1.msra.mxu0 0.0
    %1118 = vmatprep.subr.mxu0 0.0
    %1119 = vmatpush1.msra.mxu0 0.0
    %1120 = vmatprep.subr.mxu0 0.0
    %1121 = vmatpush1.msra.mxu0 0.0
    %1122 = vmatprep.subr.mxu0 0.0
    %1123 = vmatpush1.msra.mxu0 0.0
    %1124 = vmatprep.subr.mxu0 0.0
    %1125 = vmatpush1.msra.mxu0 0.0
    %1126 = vmatprep.subr.mxu0 0.0
    %1127 = vmatpush1.msra.mxu0 0.0
    %1128 = vmatprep.subr.mxu0 0.0
    %1129 = vmatpush1.msra.mxu0 0.0
    %1130 = vmatprep.subr.mxu0 0.0
    %1131 = vmatpush1.msra.mxu0 0.0
    %1132 = vmatprep.subr.mxu0 0.0
    %1133 = vmatpush1.msra.mxu0 0.0
    %1134 = vmatprep.subr.mxu0 0.0
    %1135 = vmatpush1.msra.mxu0 0.0
    %1136 = vmatprep.subr.mxu0 0.0
    %1137 = vmatpush1.msra.mxu0 0.0
    %1138 = vmatprep.subr.mxu0 0.0
    %1139 = vmatpush1.msra.mxu0 0.0
    %1140 = vmatprep.subr.mxu0 0.0
    %1141 = vmatpush1.msra.mxu0 0.0
    %1142 = vmatprep.subr.mxu0 0.0
    %1143 = vmatpush1.msra.mxu0 0.0
    %1144 = vmatprep.subr.mxu0 0.0
    %1145 = vmatpush1.msra.mxu0 0.0
    %1146 = vmatprep.subr.mxu0 0.0
    %1147 = vmatpush1.msra.mxu0 0.0
    %1148 = vmatprep.mubr.f32.mxu0 0.0
    %1149 = vmatmul.mubr.f32.gmra.mrb[0].mxu0 %v74
    %v1150 = vpop.f32.mrb[0].mxu0
    %v1151 = vadd.f32 0.0, %v1150
    %v1152 = vpop.f32.mrb[0].mxu0
    %v1153 = vadd.f32 0.0, %v1152
    %1154 = vdwg.mxu0
    %1155 = vmatprep.subr.mxu0 %v92
    %1156 = vmatpush1.msra.mxu0 %v91
    %1157 = vmatprep.subr.mxu0 %v124
    %1158 = vmatpush1.msra.mxu0 %v123
    %1159 = vmatprep.subr.mxu0 %v156
    %1160 = vmatpush1.msra.mxu0 %v155
    %1161 = vmatprep.subr.mxu0 %v188
    %1162 = vmatpush1.msra.mxu0 %v187
    %1163 = vmatprep.subr.mxu0 %v220
    %1164 = vmatpush1.msra.mxu0 %v219
    %1165 = vmatprep.subr.mxu0 %v252
    %1166 = vmatpush1.msra.mxu0 %v251
    %1167 = vmatprep.subr.mxu0 %v284
    %1168 = vmatpush1.msra.mxu0 %v283
    %1169 = vmatprep.subr.mxu0 %v316
    %1170 = vmatpush1.msra.mxu0 %v315
    %1171 = vmatprep.subr.mxu0 %v348
    %1172 = vmatpush1.msra.mxu0 %v347
    %1173 = vmatprep.subr.mxu0 %v380
    %1174 = vmatpush1.msra.mxu0 %v379
    %1175 = vmatprep.subr.mxu0 %v412
    %1176 = vmatpush1.msra.mxu0 %v411
    %1177 = vmatprep.subr.mxu0 %v444
    %1178 = vmatpush1.msra.mxu0 %v443
    %1179 = vmatprep.subr.mxu0 %v476
    %1180 = vmatpush1.msra.mxu0 %v475
    %1181 = vmatprep.subr.mxu0 %v508
    %1182 = vmatpush1.msra.mxu0 %v507
    %1183 = vmatprep.subr.mxu0 %v540
    %1184 = vmatpush1.msra.mxu0 %v539
    %1185 = vmatprep.subr.mxu0 %v572
    %1186 = vmatpush1.msra.mxu0 %v571
    %1187 = vmatprep.subr.mxu0 0.0
    %1188 = vmatpush1.msra.mxu0 0.0
    %1189 = vmatprep.subr.mxu0 0.0
    %1190 = vmatpush1.msra.mxu0 0.0
    %1191 = vmatprep.subr.mxu0 0.0
    %1192 = vmatpush1.msra.mxu0 0.0
    %1193 = vmatprep.subr.mxu0 0.0
    %1194 = vmatpush1.msra.mxu0 0.0
    %1195 = vmatprep.subr.mxu0 0.0
    %1196 = vmatpush1.msra.mxu0 0.0
    %1197 = vmatprep.subr.mxu0 0.0
    %1198 = vmatpush1.msra.mxu0 0.0
    %1199 = vmatprep.subr.mxu0 0.0
    %1200 = vmatpush1.msra.mxu0 0.0
    %1201 = vmatprep.subr.mxu0 0.0
    %1202 = vmatpush1.msra.mxu0 0.0
    %1203 = vmatprep.subr.mxu0 0.0
    %1204 = vmatpush1.msra.mxu0 0.0
    %1205 = vmatprep.subr.mxu0 0.0
    %1206 = vmatpush1.msra.mxu0 0.0
    %1207 = vmatprep.subr.mxu0 0.0
    %1208 = vmatpush1.msra.mxu0 0.0
    %1209 = vmatprep.subr.mxu0 0.0
    %1210 = vmatpush1.msra.mxu0 0.0
    %1211 = vmatprep.subr.mxu0 0.0
    %1212 = vmatpush1.msra.mxu0 0.0
    %1213 = vmatprep.subr.mxu0 0.0
    %1214 = vmatpush1.msra.mxu0 0.0
    %1215 = vmatprep.subr.mxu0 0.0
    %1216 = vmatpush1.msra.mxu0 0.0
    %1217 = vmatprep.subr.mxu0 0.0
    %1218 = vmatpush1.msra.mxu0 0.0
    %1219 = vmatprep.mubr.f32.mxu0 0.0
    %1220 = vmatmul.mubr.f32.gmra.mrb[0].mxu0 %v74
    %v1221 = vpop.f32.mrb[0].mxu0
    %v1222 = vadd.f32 0.0, %v1221
    %v1223 = vpop.f32.mrb[0].mxu0
    %v1224 = vadd.f32 0.0, %v1223
    %1225 = vdwg.mxu0
    %1226 = vmatprep.subr.mxu0 %v94
    %1227 = vmatpush1.msra.mxu0 %v93
    %1228 = vmatprep.subr.mxu0 %v126
    %1229 = vmatpush1.msra.mxu0 %v125
    %1230 = vmatprep.subr.mxu0 %v158
    %1231 = vmatpush1.msra.mxu0 %v157
    %1232 = vmatprep.subr.mxu0 %v190
    %1233 = vmatpush1.msra.mxu0 %v189
    %1234 = vmatprep.subr.mxu0 %v222
    %1235 = vmatpush1.msra.mxu0 %v221
    %1236 = vmatprep.subr.mxu0 %v254
    %1237 = vmatpush1.msra.mxu0 %v253
    %1238 = vmatprep.subr.mxu0 %v286
    %1239 = vmatpush1.msra.mxu0 %v285
    %1240 = vmatprep.subr.mxu0 %v318
    %1241 = vmatpush1.msra.mxu0 %v317
    %1242 = vmatprep.subr.mxu0 %v350
    %1243 = vmatpush1.msra.mxu0 %v349
    %1244 = vmatprep.subr.mxu0 %v382
    %1245 = vmatpush1.msra.mxu0 %v381
    %1246 = vmatprep.subr.mxu0 %v414
    %1247 = vmatpush1.msra.mxu0 %v413
    %1248 = vmatprep.subr.mxu0 %v446
    %1249 = vmatpush1.msra.mxu0 %v445
    %1250 = vmatprep.subr.mxu0 %v478
    %1251 = vmatpush1.msra.mxu0 %v477
    %1252 = vmatprep.subr.mxu0 %v510
    %1253 = vmatpush1.msra.mxu0 %v509
    %1254 = vmatprep.subr.mxu0 %v542
    %1255 = vmatpush1.msra.mxu0 %v541
    %1256 = vmatprep.subr.mxu0 %v574
    %1257 = vmatpush1.msra.mxu0 %v573
    %1258 = vmatprep.subr.mxu0 0.0
    %1259 = vmatpush1.msra.mxu0 0.0
    %1260 = vmatprep.subr.mxu0 0.0
    %1261 = vmatpush1.msra.mxu0 0.0
    %1262 = vmatprep.subr.mxu0 0.0
    %1263 = vmatpush1.msra.mxu0 0.0
    %1264 = vmatprep.subr.mxu0 0.0
    %1265 = vmatpush1.msra.mxu0 0.0
    %1266 = vmatprep.subr.mxu0 0.0
    %1267 = vmatpush1.msra.mxu0 0.0
    %1268 = vmatprep.subr.mxu0 0.0
    %1269 = vmatpush1.msra.mxu0 0.0
    %1270 = vmatprep.subr.mxu0 0.0
    %1271 = vmatpush1.msra.mxu0 0.0
    %1272 = vmatprep.subr.mxu0 0.0
    %1273 = vmatpush1.msra.mxu0 0.0
    %1274 = vmatprep.subr.mxu0 0.0
    %1275 = vmatpush1.msra.mxu0 0.0
    %1276 = vmatprep.subr.mxu0 0.0
    %1277 = vmatpush1.msra.mxu0 0.0
    %1278 = vmatprep.subr.mxu0 0.0
    %1279 = vmatpush1.msra.mxu0 0.0
    %1280 = vmatprep.subr.mxu0 0.0
    %1281 = vmatpush1.msra.mxu0 0.0
    %1282 = vmatprep.subr.mxu0 0.0
    %1283 = vmatpush1.msra.mxu0 0.0
    %1284 = vmatprep.subr.mxu0 0.0
    %1285 = vmatpush1.msra.mxu0 0.0
    %1286 = vmatprep.subr.mxu0 0.0
    %1287 = vmatpush1.msra.mxu0 0.0
    %1288 = vmatprep.subr.mxu0 0.0
    %1289 = vmatpush1.msra.mxu0 0.0
    %1290 = vmatprep.mubr.f32.mxu0 0.0
    %1291 = vmatmul.mubr.f32.gmra.mrb[0].mxu0 %v74
    %v1292 = vpop.f32.mrb[0].mxu0
    %v1293 = vadd.f32 0.0, %v1292
    %v1294 = vpop.f32.mrb[0].mxu0
    %v1295 = vadd.f32 0.0, %v1294
    %1296 = vdwg.mxu0
    %1297 = vmatprep.subr.mxu0 %v96
    %1298 = vmatpush1.msra.mxu0 %v95
    %1299 = vmatprep.subr.mxu0 %v128
    %1300 = vmatpush1.msra.mxu0 %v127
    %1301 = vmatprep.subr.mxu0 %v160
    %1302 = vmatpush1.msra.mxu0 %v159
    %1303 = vmatprep.subr.mxu0 %v192
    %1304 = vmatpush1.msra.mxu0 %v191
    %1305 = vmatprep.subr.mxu0 %v224
    %1306 = vmatpush1.msra.mxu0 %v223
    %1307 = vmatprep.subr.mxu0 %v256
    %1308 = vmatpush1.msra.mxu0 %v255
    %1309 = vmatprep.subr.mxu0 %v288
    %1310 = vmatpush1.msra.mxu0 %v287
    %1311 = vmatprep.subr.mxu0 %v320
    %1312 = vmatpush1.msra.mxu0 %v319
    %1313 = vmatprep.subr.mxu0 %v352
    %1314 = vmatpush1.msra.mxu0 %v351
    %1315 = vmatprep.subr.mxu0 %v384
    %1316 = vmatpush1.msra.mxu0 %v383
    %1317 = vmatprep.subr.mxu0 %v416
    %1318 = vmatpush1.msra.mxu0 %v415
    %1319 = vmatprep.subr.mxu0 %v448
    %1320 = vmatpush1.msra.mxu0 %v447
    %1321 = vmatprep.subr.mxu0 %v480
    %1322 = vmatpush1.msra.mxu0 %v479
    %1323 = vmatprep.subr.mxu0 %v512
    %1324 = vmatpush1.msra.mxu0 %v511
    %1325 = vmatprep.subr.mxu0 %v544
    %1326 = vmatpush1.msra.mxu0 %v543
    %1327 = vmatprep.subr.mxu0 %v576
    %1328 = vmatpush1.msra.mxu0 %v575
    %1329 = vmatprep.subr.mxu0 0.0
    %1330 = vmatpush1.msra.mxu0 0.0
    %1331 = vmatprep.subr.mxu0 0.0
    %1332 = vmatpush1.msra.mxu0 0.0
    %1333 = vmatprep.subr.mxu0 0.0
    %1334 = vmatpush1.msra.mxu0 0.0
    %1335 = vmatprep.subr.mxu0 0.0
    %1336 = vmatpush1.msra.mxu0 0.0
    %1337 = vmatprep.subr.mxu0 0.0
    %1338 = vmatpush1.msra.mxu0 0.0
    %1339 = vmatprep.subr.mxu0 0.0
    %1340 = vmatpush1.msra.mxu0 0.0
    %1341 = vmatprep.subr.mxu0 0.0
    %1342 = vmatpush1.msra.mxu0 0.0
    %1343 = vmatprep.subr.mxu0 0.0
    %1344 = vmatpush1.msra.mxu0 0.0
    %1345 = vmatprep.subr.mxu0 0.0
    %1346 = vmatpush1.msra.mxu0 0.0
    %1347 = vmatprep.subr.mxu0 0.0
    %1348 = vmatpush1.msra.mxu0 0.0
    %1349 = vmatprep.subr.mxu0 0.0
    %1350 = vmatpush1.msra.mxu0 0.0
    %1351 = vmatprep.subr.mxu0 0.0
    %1352 = vmatpush1.msra.mxu0 0.0
    %1353 = vmatprep.subr.mxu0 0.0
    %1354 = vmatpush1.msra.mxu0 0.0
    %1355 = vmatprep.subr.mxu0 0.0
    %1356 = vmatpush1.msra.mxu0 0.0
    %1357 = vmatprep.subr.mxu0 0.0
    %1358 = vmatpush1.msra.mxu0 0.0
    %1359 = vmatprep.subr.mxu0 0.0
    %1360 = vmatpush1.msra.mxu0 0.0
    %1361 = vmatprep.mubr.f32.mxu0 0.0
    %1362 = vmatmul.mubr.f32.gmra.mrb[0].mxu0 %v74
    %v1363 = vpop.f32.mrb[0].mxu0
    %v1364 = vadd.f32 0.0, %v1363
    %v1365 = vpop.f32.mrb[0].mxu0
    %v1366 = vadd.f32 0.0, %v1365
    %1367 = vdwg.mxu0
    %1368 = vmatprep.subr.mxu0 %v98
    %1369 = vmatpush1.msra.mxu0 %v97
    %1370 = vmatprep.subr.mxu0 %v130
    %1371 = vmatpush1.msra.mxu0 %v129
    %1372 = vmatprep.subr.mxu0 %v162
    %1373 = vmatpush1.msra.mxu0 %v161
    %1374 = vmatprep.subr.mxu0 %v194
    %1375 = vmatpush1.msra.mxu0 %v193
    %1376 = vmatprep.subr.mxu0 %v226
    %1377 = vmatpush1.msra.mxu0 %v225
    %1378 = vmatprep.subr.mxu0 %v258
    %1379 = vmatpush1.msra.mxu0 %v257
    %1380 = vmatprep.subr.mxu0 %v290
    %1381 = vmatpush1.msra.mxu0 %v289
    %1382 = vmatprep.subr.mxu0 %v322
    %1383 = vmatpush1.msra.mxu0 %v321
    %1384 = vmatprep.subr.mxu0 %v354
    %1385 = vmatpush1.msra.mxu0 %v353
    %1386 = vmatprep.subr.mxu0 %v386
    %1387 = vmatpush1.msra.mxu0 %v385
    %1388 = vmatprep.subr.mxu0 %v418
    %1389 = vmatpush1.msra.mxu0 %v417
    %1390 = vmatprep.subr.mxu0 %v450
    %1391 = vmatpush1.msra.mxu0 %v449
    %1392 = vmatprep.subr.mxu0 %v482
    %1393 = vmatpush1.msra.mxu0 %v481
    %1394 = vmatprep.subr.mxu0 %v514
    %1395 = vmatpush1.msra.mxu0 %v513
    %1396 = vmatprep.subr.mxu0 %v546
    %1397 = vmatpush1.msra.mxu0 %v545
    %1398 = vmatprep.subr.mxu0 %v578
    %1399 = vmatpush1.msra.mxu0 %v577
    %1400 = vmatprep.subr.mxu0 0.0
    %1401 = vmatpush1.msra.mxu0 0.0
    %1402 = vmatprep.subr.mxu0 0.0
    %1403 = vmatpush1.msra.mxu0 0.0
    %1404 = vmatprep.subr.mxu0 0.0
    %1405 = vmatpush1.msra.mxu0 0.0
    %1406 = vmatprep.subr.mxu0 0.0
    %1407 = vmatpush1.msra.mxu0 0.0
    %1408 = vmatprep.subr.mxu0 0.0
    %1409 = vmatpush1.msra.mxu0 0.0
    %1410 = vmatprep.subr.mxu0 0.0
    %1411 = vmatpush1.msra.mxu0 0.0
    %1412 = vmatprep.subr.mxu0 0.0
    %1413 = vmatpush1.msra.mxu0 0.0
    %1414 = vmatprep.subr.mxu0 0.0
    %1415 = vmatpush1.msra.mxu0 0.0
    %1416 = vmatprep.subr.mxu0 0.0
    %1417 = vmatpush1.msra.mxu0 0.0
    %1418 = vmatprep.subr.mxu0 0.0
    %1419 = vmatpush1.msra.mxu0 0.0
    %1420 = vmatprep.subr.mxu0 0.0
    %1421 = vmatpush1.msra.mxu0 0.0
    %1422 = vmatprep.subr.mxu0 0.0
    %1423 = vmatpush1.msra.mxu0 0.0
    %1424 = vmatprep.subr.mxu0 0.0
    %1425 = vmatpush1.msra.mxu0 0.0
    %1426 = vmatprep.subr.mxu0 0.0
    %1427 = vmatpush1.msra.mxu0 0.0
    %1428 = vmatprep.subr.mxu0 0.0
    %1429 = vmatpush1.msra.mxu0 0.0
    %1430 = vmatprep.subr.mxu0 0.0
    %1431 = vmatpush1.msra.mxu0 0.0
    %1432 = vmatprep.mubr.f32.mxu0 0.0
    %1433 = vmatmul.mubr.f32.gmra.mrb[0].mxu0 %v74
    %v1434 = vpop.f32.mrb[0].mxu0
    %v1435 = vadd.f32 0.0, %v1434
    %v1436 = vpop.f32.mrb[0].mxu0
    %v1437 = vadd.f32 0.0, %v1436
    %1438 = vdwg.mxu0
    %1439 = vmatprep.subr.mxu0 %v100
    %1440 = vmatpush1.msra.mxu0 %v99
    %1441 = vmatprep.subr.mxu0 %v132
    %1442 = vmatpush1.msra.mxu0 %v131
    %1443 = vmatprep.subr.mxu0 %v164
    %1444 = vmatpush1.msra.mxu0 %v163
    %1445 = vmatprep.subr.mxu0 %v196
    %1446 = vmatpush1.msra.mxu0 %v195
    %1447 = vmatprep.subr.mxu0 %v228
    %1448 = vmatpush1.msra.mxu0 %v227
    %1449 = vmatprep.subr.mxu0 %v260
    %1450 = vmatpush1.msra.mxu0 %v259
    %1451 = vmatprep.subr.mxu0 %v292
    %1452 = vmatpush1.msra.mxu0 %v291
    %1453 = vmatprep.subr.mxu0 %v324
    %1454 = vmatpush1.msra.mxu0 %v323
    %1455 = vmatprep.subr.mxu0 %v356
    %1456 = vmatpush1.msra.mxu0 %v355
    %1457 = vmatprep.subr.mxu0 %v388
    %1458 = vmatpush1.msra.mxu0 %v387
    %1459 = vmatprep.subr.mxu0 %v420
    %1460 = vmatpush1.msra.mxu0 %v419
    %1461 = vmatprep.subr.mxu0 %v452
    %1462 = vmatpush1.msra.mxu0 %v451
    %1463 = vmatprep.subr.mxu0 %v484
    %1464 = vmatpush1.msra.mxu0 %v483
    %1465 = vmatprep.subr.mxu0 %v516
    %1466 = vmatpush1.msra.mxu0 %v515
    %1467 = vmatprep.subr.mxu0 %v548
    %1468 = vmatpush1.msra.mxu0 %v547
    %1469 = vmatprep.subr.mxu0 %v580
    %1470 = vmatpush1.msra.mxu0 %v579
    %1471 = vmatprep.subr.mxu0 0.0
    %1472 = vmatpush1.msra.mxu0 0.0
    %1473 = vmatprep.subr.mxu0 0.0
    %1474 = vmatpush1.msra.mxu0 0.0
    %1475 = vmatprep.subr.mxu0 0.0
    %1476 = vmatpush1.msra.mxu0 0.0
    %1477 = vmatprep.subr.mxu0 0.0
    %1478 = vmatpush1.msra.mxu0 0.0
    %1479 = vmatprep.subr.mxu0 0.0
    %1480 = vmatpush1.msra.mxu0 0.0
    %1481 = vmatprep.subr.mxu0 0.0
    %1482 = vmatpush1.msra.mxu0 0.0
    %1483 = vmatprep.subr.mxu0 0.0
    %1484 = vmatpush1.msra.mxu0 0.0
    %1485 = vmatprep.subr.mxu0 0.0
    %1486 = vmatpush1.msra.mxu0 0.0
    %1487 = vmatprep.subr.mxu0 0.0
    %1488 = vmatpush1.msra.mxu0 0.0
    %1489 = vmatprep.subr.mxu0 0.0
    %1490 = vmatpush1.msra.mxu0 0.0
    %1491 = vmatprep.subr.mxu0 0.0
    %1492 = vmatpush1.msra.mxu0 0.0
    %1493 = vmatprep.subr.mxu0 0.0
    %1494 = vmatpush1.msra.mxu0 0.0
    %1495 = vmatprep.subr.mxu0 0.0
    %1496 = vmatpush1.msra.mxu0 0.0
    %1497 = vmatprep.subr.mxu0 0.0
    %1498 = vmatpush1.msra.mxu0 0.0
    %1499 = vmatprep.subr.mxu0 0.0
    %1500 = vmatpush1.msra.mxu0 0.0
    %1501 = vmatprep.subr.mxu0 0.0
    %1502 = vmatpush1.msra.mxu0 0.0
    %1503 = vmatprep.mubr.f32.mxu0 0.0
    %1504 = vmatmul.mubr.f32.gmra.mrb[0].mxu0 %v74
    %v1505 = vpop.f32.mrb[0].mxu0
    %v1506 = vadd.f32 0.0, %v1505
    %v1507 = vpop.f32.mrb[0].mxu0
    %v1508 = vadd.f32 0.0, %v1507
    %1509 = vdwg.mxu0
    %1510 = vmatprep.subr.mxu0 %v102
    %1511 = vmatpush1.msra.mxu0 %v101
    %1512 = vmatprep.subr.mxu0 %v134
    %1513 = vmatpush1.msra.mxu0 %v133
    %1514 = vmatprep.subr.mxu0 %v166
    %1515 = vmatpush1.msra.mxu0 %v165
    %1516 = vmatprep.subr.mxu0 %v198
    %1517 = vmatpush1.msra.mxu0 %v197
    %1518 = vmatprep.subr.mxu0 %v230
    %1519 = vmatpush1.msra.mxu0 %v229
    %1520 = vmatprep.subr.mxu0 %v262
    %1521 = vmatpush1.msra.mxu0 %v261
    %1522 = vmatprep.subr.mxu0 %v294
    %1523 = vmatpush1.msra.mxu0 %v293
    %1524 = vmatprep.subr.mxu0 %v326
    %1525 = vmatpush1.msra.mxu0 %v325
    %1526 = vmatprep.subr.mxu0 %v358
    %1527 = vmatpush1.msra.mxu0 %v357
    %1528 = vmatprep.subr.mxu0 %v390
    %1529 = vmatpush1.msra.mxu0 %v389
    %1530 = vmatprep.subr.mxu0 %v422
    %1531 = vmatpush1.msra.mxu0 %v421
    %1532 = vmatprep.subr.mxu0 %v454
    %1533 = vmatpush1.msra.mxu0 %v453
    %1534 = vmatprep.subr.mxu0 %v486
    %1535 = vmatpush1.msra.mxu0 %v485
    %1536 = vmatprep.subr.mxu0 %v518
    %1537 = vmatpush1.msra.mxu0 %v517
    %1538 = vmatprep.subr.mxu0 %v550
    %1539 = vmatpush1.msra.mxu0 %v549
    %1540 = vmatprep.subr.mxu0 %v582
    %1541 = vmatpush1.msra.mxu0 %v581
    %1542 = vmatprep.subr.mxu0 0.0
    %1543 = vmatpush1.msra.mxu0 0.0
    %1544 = vmatprep.subr.mxu0 0.0
    %1545 = vmatpush1.msra.mxu0 0.0
    %1546 = vmatprep.subr.mxu0 0.0
    %1547 = vmatpush1.msra.mxu0 0.0
    %1548 = vmatprep.subr.mxu0 0.0
    %1549 = vmatpush1.msra.mxu0 0.0
    %1550 = vmatprep.subr.mxu0 0.0
    %1551 = vmatpush1.msra.mxu0 0.0
    %1552 = vmatprep.subr.mxu0 0.0
    %1553 = vmatpush1.msra.mxu0 0.0
    %1554 = vmatprep.subr.mxu0 0.0
    %1555 = vmatpush1.msra.mxu0 0.0
    %1556 = vmatprep.subr.mxu0 0.0
    %1557 = vmatpush1.msra.mxu0 0.0
    %1558 = vmatprep.subr.mxu0 0.0
    %1559 = vmatpush1.msra.mxu0 0.0
    %1560 = vmatprep.subr.mxu0 0.0
    %1561 = vmatpush1.msra.mxu0 0.0
    %1562 = vmatprep.subr.mxu0 0.0
    %1563 = vmatpush1.msra.mxu0 0.0
    %1564 = vmatprep.subr.mxu0 0.0
    %1565 = vmatpush1.msra.mxu0 0.0
    %1566 = vmatprep.subr.mxu0 0.0
    %1567 = vmatpush1.msra.mxu0 0.0
    %1568 = vmatprep.subr.mxu0 0.0
    %1569 = vmatpush1.msra.mxu0 0.0
    %1570 = vmatprep.subr.mxu0 0.0
    %1571 = vmatpush1.msra.mxu0 0.0
    %1572 = vmatprep.subr.mxu0 0.0
    %1573 = vmatpush1.msra.mxu0 0.0
    %1574 = vmatprep.mubr.f32.mxu0 0.0
    %1575 = vmatmul.mubr.f32.gmra.mrb[0].mxu0 %v74
    %v1576 = vpop.f32.mrb[0].mxu0
    %v1577 = vadd.f32 0.0, %v1576
    %v1578 = vpop.f32.mrb[0].mxu0
    %v1579 = vadd.f32 0.0, %v1578
    %1580 = vdwg.mxu0
    %1581 = vmatprep.subr.mxu0 %v104
    %1582 = vmatpush1.msra.mxu0 %v103
    %1583 = vmatprep.subr.mxu0 %v136
    %1584 = vmatpush1.msra.mxu0 %v135
    %1585 = vmatprep.subr.mxu0 %v168
    %1586 = vmatpush1.msra.mxu0 %v167
    %1587 = vmatprep.subr.mxu0 %v200
    %1588 = vmatpush1.msra.mxu0 %v199
    %1589 = vmatprep.subr.mxu0 %v232
    %1590 = vmatpush1.msra.mxu0 %v231
    %1591 = vmatprep.subr.mxu0 %v264
    %1592 = vmatpush1.msra.mxu0 %v263
    %1593 = vmatprep.subr.mxu0 %v296
    %1594 = vmatpush1.msra.mxu0 %v295
    %1595 = vmatprep.subr.mxu0 %v328
    %1596 = vmatpush1.msra.mxu0 %v327
    %1597 = vmatprep.subr.mxu0 %v360
    %1598 = vmatpush1.msra.mxu0 %v359
    %1599 = vmatprep.subr.mxu0 %v392
    %1600 = vmatpush1.msra.mxu0 %v391
    %1601 = vmatprep.subr.mxu0 %v424
    %1602 = vmatpush1.msra.mxu0 %v423
    %1603 = vmatprep.subr.mxu0 %v456
    %1604 = vmatpush1.msra.mxu0 %v455
    %1605 = vmatprep.subr.mxu0 %v488
    %1606 = vmatpush1.msra.mxu0 %v487
    %1607 = vmatprep.subr.mxu0 %v520
    %1608 = vmatpush1.msra.mxu0 %v519
    %1609 = vmatprep.subr.mxu0 %v552
    %1610 = vmatpush1.msra.mxu0 %v551
    %1611 = vmatprep.subr.mxu0 %v584
    %1612 = vmatpush1.msra.mxu0 %v583
    %1613 = vmatprep.subr.mxu0 0.0
    %1614 = vmatpush1.msra.mxu0 0.0
    %1615 = vmatprep.subr.mxu0 0.0
    %1616 = vmatpush1.msra.mxu0 0.0
    %1617 = vmatprep.subr.mxu0 0.0
    %1618 = vmatpush1.msra.mxu0 0.0
    %1619 = vmatprep.subr.mxu0 0.0
    %1620 = vmatpush1.msra.mxu0 0.0
    %1621 = vmatprep.subr.mxu0 0.0
    %1622 = vmatpush1.msra.mxu0 0.0
    %1623 = vmatprep.subr.mxu0 0.0
    %1624 = vmatpush1.msra.mxu0 0.0
    %1625 = vmatprep.subr.mxu0 0.0
    %1626 = vmatpush1.msra.mxu0 0.0
    %1627 = vmatprep.subr.mxu0 0.0
    %1628 = vmatpush1.msra.mxu0 0.0
    %1629 = vmatprep.subr.mxu0 0.0
    %1630 = vmatpush1.msra.mxu0 0.0
    %1631 = vmatprep.subr.mxu0 0.0
    %1632 = vmatpush1.msra.mxu0 0.0
    %1633 = vmatprep.subr.mxu0 0.0
    %1634 = vmatpush1.msra.mxu0 0.0
    %1635 = vmatprep.subr.mxu0 0.0
    %1636 = vmatpush1.msra.mxu0 0.0
    %1637 = vmatprep.subr.mxu0 0.0
    %1638 = vmatpush1.msra.mxu0 0.0
    %1639 = vmatprep.subr.mxu0 0.0
    %1640 = vmatpush1.msra.mxu0 0.0
    %1641 = vmatprep.subr.mxu0 0.0
    %1642 = vmatpush1.msra.mxu0 0.0
    %1643 = vmatprep.subr.mxu0 0.0
    %1644 = vmatpush1.msra.mxu0 0.0
    %1645 = vmatprep.mubr.f32.mxu0 0.0
    %1646 = vmatmul.mubr.f32.gmra.mrb[0].mxu0 %v74
    %v1647 = vpop.f32.mrb[0].mxu0
    %v1648 = vadd.f32 0.0, %v1647
    %v1649 = vpop.f32.mrb[0].mxu0
    %v1650 = vadd.f32 0.0, %v1649
    %1651 = vdwg.mxu0
    %1652 = vmatprep.subr.mxu0 %v106
    %1653 = vmatpush1.msra.mxu0 %v105
    %1654 = vmatprep.subr.mxu0 %v138
    %1655 = vmatpush1.msra.mxu0 %v137
    %1656 = vmatprep.subr.mxu0 %v170
    %1657 = vmatpush1.msra.mxu0 %v169
    %1658 = vmatprep.subr.mxu0 %v202
    %1659 = vmatpush1.msra.mxu0 %v201
    %1660 = vmatprep.subr.mxu0 %v234
    %1661 = vmatpush1.msra.mxu0 %v233
    %1662 = vmatprep.subr.mxu0 %v266
    %1663 = vmatpush1.msra.mxu0 %v265
    %1664 = vmatprep.subr.mxu0 %v298
    %1665 = vmatpush1.msra.mxu0 %v297
    %1666 = vmatprep.subr.mxu0 %v330
    %1667 = vmatpush1.msra.mxu0 %v329
    %1668 = vmatprep.subr.mxu0 %v362
    %1669 = vmatpush1.msra.mxu0 %v361
    %1670 = vmatprep.subr.mxu0 %v394
    %1671 = vmatpush1.msra.mxu0 %v393
    %1672 = vmatprep.subr.mxu0 %v426
    %1673 = vmatpush1.msra.mxu0 %v425
    %1674 = vmatprep.subr.mxu0 %v458
    %1675 = vmatpush1.msra.mxu0 %v457
    %1676 = vmatprep.subr.mxu0 %v490
    %1677 = vmatpush1.msra.mxu0 %v489
    %1678 = vmatprep.subr.mxu0 %v522
    %1679 = vmatpush1.msra.mxu0 %v521
    %1680 = vmatprep.subr.mxu0 %v554
    %1681 = vmatpush1.msra.mxu0 %v553
    %1682 = vmatprep.subr.mxu0 %v586
    %1683 = vmatpush1.msra.mxu0 %v585
    %1684 = vmatprep.subr.mxu0 0.0
    %1685 = vmatpush1.msra.mxu0 0.0
    %1686 = vmatprep.subr.mxu0 0.0
    %1687 = vmatpush1.msra.mxu0 0.0
    %1688 = vmatprep.subr.mxu0 0.0
    %1689 = vmatpush1.msra.mxu0 0.0
    %1690 = vmatprep.subr.mxu0 0.0
    %1691 = vmatpush1.msra.mxu0 0.0
    %1692 = vmatprep.subr.mxu0 0.0
    %1693 = vmatpush1.msra.mxu0 0.0
    %1694 = vmatprep.subr.mxu0 0.0
    %1695 = vmatpush1.msra.mxu0 0.0
    %1696 = vmatprep.subr.mxu0 0.0
    %1697 = vmatpush1.msra.mxu0 0.0
    %1698 = vmatprep.subr.mxu0 0.0
    %1699 = vmatpush1.msra.mxu0 0.0
    %1700 = vmatprep.subr.mxu0 0.0
    %1701 = vmatpush1.msra.mxu0 0.0
    %1702 = vmatprep.subr.mxu0 0.0
    %1703 = vmatpush1.msra.mxu0 0.0
    %1704 = vmatprep.subr.mxu0 0.0
    %1705 = vmatpush1.msra.mxu0 0.0
    %1706 = vmatprep.subr.mxu0 0.0
    %1707 = vmatpush1.msra.mxu0 0.0
    %1708 = vmatprep.subr.mxu0 0.0
    %1709 = vmatpush1.msra.mxu0 0.0
    %1710 = vmatprep.subr.mxu0 0.0
    %1711 = vmatpush1.msra.mxu0 0.0
    %1712 = vmatprep.subr.mxu0 0.0
    %1713 = vmatpush1.msra.mxu0 0.0
    %1714 = vmatprep.subr.mxu0 0.0
    %1715 = vmatpush1.msra.mxu0 0.0
    %1716 = vmatprep.mubr.f32.mxu0 0.0
    %1717 = vmatmul.mubr.f32.gmra.mrb[0].mxu0 %v74
    %v1718 = vpop.f32.mrb[0].mxu0
    %v1719 = vadd.f32 0.0, %v1718
    %v1720 = vpop.f32.mrb[0].mxu0
    %v1721 = vadd.f32 0.0, %v1720
    %1722 = vdwg.mxu0
    %v1723 = vmul.f32 %v74, %v74
    %1724 = vadd.xlane.f32.xlu0 %v1723
    %v1725 = vpop.xlane.xlu0 %1724
    %v1726 = vld [vmem:[#allocation4] sm:$0xff]
    %v1727 = vld [vmem:[#allocation4 + $0x8] sm:$0xff]
    %v1728 = vld [vmem:[#allocation4 + $0x10] sm:$0xff]
    %v1729 = vld [vmem:[#allocation4 + $0x18] sm:$0xff]
    %v1734 = vlaneseq
    %v1735 = vshrl.u32 %v1734, 7
    %v1736 = vsub.s32 0, %v1735
    %v1737 = vrot.slane %v1726, %v1736
    %v1738 = vlaneseq
    %v1739 = vshrl.u32 %v1738, 7
    %v1740 = vsub.s32 1, %v1739
    %v1741 = vrot.slane %v1726, %v1740
    %v1742 = vlaneseq
    %v1743 = vshrl.u32 %v1742, 7
    %v1744 = vsub.s32 2, %v1743
    %v1745 = vrot.slane %v1726, %v1744
    %v1746 = vlaneseq
    %v1747 = vshrl.u32 %v1746, 7
    %v1748 = vsub.s32 3, %v1747
    %v1749 = vrot.slane %v1726, %v1748
    %v1750 = vlaneseq
    %v1751 = vshrl.u32 %v1750, 7
    %v1752 = vsub.s32 4, %v1751
    %v1753 = vrot.slane %v1726, %v1752
    %v1754 = vlaneseq
    %v1755 = vshrl.u32 %v1754, 7
    %v1756 = vsub.s32 5, %v1755
    %v1757 = vrot.slane %v1726, %v1756
    %v1758 = vlaneseq
    %v1759 = vshrl.u32 %v1758, 7
    %v1760 = vsub.s32 6, %v1759
    %v1761 = vrot.slane %v1726, %v1760
    %v1762 = vlaneseq
    %v1763 = vshrl.u32 %v1762, 7
    %v1764 = vsub.s32 7, %v1763
    %v1765 = vrot.slane %v1726, %v1764
    %v1766 = vlaneseq
    %v1767 = vshrl.u32 %v1766, 7
    %v1768 = vsub.s32 0, %v1767
    %v1769 = vrot.slane %v1727, %v1768
    %v1770 = vlaneseq
    %v1771 = vshrl.u32 %v1770, 7
    %v1772 = vsub.s32 1, %v1771
    %v1773 = vrot.slane %v1727, %v1772
    %v1774 = vlaneseq
    %v1775 = vshrl.u32 %v1774, 7
    %v1776 = vsub.s32 2, %v1775
    %v1777 = vrot.slane %v1727, %v1776
    %v1778 = vlaneseq
    %v1779 = vshrl.u32 %v1778, 7
    %v1780 = vsub.s32 3, %v1779
    %v1781 = vrot.slane %v1727, %v1780
    %v1782 = vlaneseq
    %v1783 = vshrl.u32 %v1782, 7
    %v1784 = vsub.s32 4, %v1783
    %v1785 = vrot.slane %v1727, %v1784
    %v1786 = vlaneseq
    %v1787 = vshrl.u32 %v1786, 7
    %v1788 = vsub.s32 5, %v1787
    %v1789 = vrot.slane %v1727, %v1788
    %v1790 = vlaneseq
    %v1791 = vshrl.u32 %v1790, 7
    %v1792 = vsub.s32 6, %v1791
    %v1793 = vrot.slane %v1727, %v1792
    %v1794 = vlaneseq
    %v1795 = vshrl.u32 %v1794, 7
    %v1796 = vsub.s32 7, %v1795
    %v1797 = vrot.slane %v1727, %v1796
    %v1798 = vlaneseq
    %v1799 = vshrl.u32 %v1798, 7
    %v1800 = vsub.s32 0, %v1799
    %v1801 = vrot.slane %v1728, %v1800
    %v1802 = vlaneseq
    %v1803 = vshrl.u32 %v1802, 7
    %v1804 = vsub.s32 1, %v1803
    %v1805 = vrot.slane %v1728, %v1804
    %v1806 = vlaneseq
    %v1807 = vshrl.u32 %v1806, 7
    %v1808 = vsub.s32 2, %v1807
    %v1809 = vrot.slane %v1728, %v1808
    %v1810 = vlaneseq
    %v1811 = vshrl.u32 %v1810, 7
    %v1812 = vsub.s32 3, %v1811
    %v1813 = vrot.slane %v1728, %v1812
    %v1814 = vlaneseq
    %v1815 = vshrl.u32 %v1814, 7
    %v1816 = vsub.s32 4, %v1815
    %v1817 = vrot.slane %v1728, %v1816
    %v1818 = vlaneseq
    %v1819 = vshrl.u32 %v1818, 7
    %v1820 = vsub.s32 5, %v1819
    %v1821 = vrot.slane %v1728, %v1820
    %v1822 = vlaneseq
    %v1823 = vshrl.u32 %v1822, 7
    %v1824 = vsub.s32 6, %v1823
    %v1825 = vrot.slane %v1728, %v1824
    %v1826 = vlaneseq
    %v1827 = vshrl.u32 %v1826, 7
    %v1828 = vsub.s32 7, %v1827
    %v1829 = vrot.slane %v1728, %v1828
    %v1830 = vlaneseq
    %v1831 = vshrl.u32 %v1830, 7
    %v1832 = vsub.s32 0, %v1831
    %v1833 = vrot.slane %v1729, %v1832
    %v1834 = vlaneseq
    %v1835 = vshrl.u32 %v1834, 7
    %v1836 = vsub.s32 1, %v1835
    %v1837 = vrot.slane %v1729, %v1836
    %v1838 = vlaneseq
    %v1839 = vshrl.u32 %v1838, 7
    %v1840 = vsub.s32 2, %v1839
    %v1841 = vrot.slane %v1729, %v1840
    %v1842 = vlaneseq
    %v1843 = vshrl.u32 %v1842, 7
    %v1844 = vsub.s32 3, %v1843
    %v1845 = vrot.slane %v1729, %v1844
    %v1846 = vlaneseq
    %v1847 = vshrl.u32 %v1846, 7
    %v1848 = vsub.s32 4, %v1847
    %v1849 = vrot.slane %v1729, %v1848
    %v1850 = vlaneseq
    %v1851 = vshrl.u32 %v1850, 7
    %v1852 = vsub.s32 5, %v1851
    %v1853 = vrot.slane %v1729, %v1852
    %v1854 = vlaneseq
    %v1855 = vshrl.u32 %v1854, 7
    %v1856 = vsub.s32 6, %v1855
    %v1857 = vrot.slane %v1729, %v1856
    %v1858 = vlaneseq
    %v1859 = vshrl.u32 %v1858, 7
    %v1860 = vsub.s32 7, %v1859
    %v1861 = vrot.slane %v1729, %v1860
    %v1894 = vadd.f32 %v1725, %v1737
    %v1895 = vadd.f32 %v1725, %v1741
    %v1896 = vadd.f32 %v1725, %v1745
    %v1897 = vadd.f32 %v1725, %v1749
    %v1898 = vadd.f32 %v1725, %v1753
    %v1899 = vadd.f32 %v1725, %v1757
    %v1900 = vadd.f32 %v1725, %v1761
    %v1901 = vadd.f32 %v1725, %v1765
    %v1902 = vadd.f32 %v1725, %v1769
    %v1903 = vadd.f32 %v1725, %v1773
    %v1904 = vadd.f32 %v1725, %v1777
    %v1905 = vadd.f32 %v1725, %v1781
    %v1906 = vadd.f32 %v1725, %v1785
    %v1907 = vadd.f32 %v1725, %v1789
    %v1908 = vadd.f32 %v1725, %v1793
    %v1909 = vadd.f32 %v1725, %v1797
    %v1910 = vadd.f32 %v1725, %v1801
    %v1911 = vadd.f32 %v1725, %v1805
    %v1912 = vadd.f32 %v1725, %v1809
    %v1913 = vadd.f32 %v1725, %v1813
    %v1914 = vadd.f32 %v1725, %v1817
    %v1915 = vadd.f32 %v1725, %v1821
    %v1916 = vadd.f32 %v1725, %v1825
    %v1917 = vadd.f32 %v1725, %v1829
    %v1918 = vadd.f32 %v1725, %v1833
    %v1919 = vadd.f32 %v1725, %v1837
    %v1920 = vadd.f32 %v1725, %v1841
    %v1921 = vadd.f32 %v1725, %v1845
    %v1922 = vadd.f32 %v1725, %v1849
    %v1923 = vadd.f32 %v1725, %v1853
    %v1924 = vadd.f32 %v1725, %v1857
    %v1925 = vadd.f32 %v1725, %v1861
    %v1926 = vmul.f32 %v654, 2.0
    %v1927 = vmul.f32 %v656, 2.0
    %v1928 = vmul.f32 %v725, 2.0
    %v1929 = vmul.f32 %v727, 2.0
    %v1930 = vmul.f32 %v796, 2.0
    %v1931 = vmul.f32 %v798, 2.0
    %v1932 = vmul.f32 %v867, 2.0
    %v1933 = vmul.f32 %v869, 2.0
    %v1934 = vmul.f32 %v938, 2.0
    %v1935 = vmul.f32 %v940, 2.0
    %v1936 = vmul.f32 %v1009, 2.0
    %v1937 = vmul.f32 %v1011, 2.0
    %v1938 = vmul.f32 %v1080, 2.0
    %v1939 = vmul.f32 %v1082, 2.0
    %v1940 = vmul.f32 %v1151, 2.0
    %v1941 = vmul.f32 %v1153, 2.0
    %v1942 = vmul.f32 %v1222, 2.0
    %v1943 = vmul.f32 %v1224, 2.0
    %v1944 = vmul.f32 %v1293, 2.0
    %v1945 = vmul.f32 %v1295, 2.0
    %v1946 = vmul.f32 %v1364, 2.0
    %v1947 = vmul.f32 %v1366, 2.0
    %v1948 = vmul.f32 %v1435, 2.0
    %v1949 = vmul.f32 %v1437, 2.0
    %v1950 = vmul.f32 %v1506, 2.0
    %v1951 = vmul.f32 %v1508, 2.0
    %v1952 = vmul.f32 %v1577, 2.0
    %v1953 = vmul.f32 %v1579, 2.0
    %v1954 = vmul.f32 %v1648, 2.0
    %v1955 = vmul.f32 %v1650, 2.0
    %v1956 = vmul.f32 %v1719, 2.0
    %v1957 = vmul.f32 %v1721, 2.0
    %v1958 = vsub.f32 %v1894, %v1926
    %v1959 = vsub.f32 %v1895, %v1927
    %v1960 = vsub.f32 %v1896, %v1928
    %v1961 = vsub.f32 %v1897, %v1929
    %v1962 = vsub.f32 %v1898, %v1930
    %v1963 = vsub.f32 %v1899, %v1931
    %v1964 = vsub.f32 %v1900, %v1932
    %v1965 = vsub.f32 %v1901, %v1933
    %v1966 = vsub.f32 %v1902, %v1934
    %v1967 = vsub.f32 %v1903, %v1935
    %v1968 = vsub.f32 %v1904, %v1936
    %v1969 = vsub.f32 %v1905, %v1937
    %v1970 = vsub.f32 %v1906, %v1938
    %v1971 = vsub.f32 %v1907, %v1939
    %v1972 = vsub.f32 %v1908, %v1940
    %v1973 = vsub.f32 %v1909, %v1941
    %v1974 = vsub.f32 %v1910, %v1942
    %v1975 = vsub.f32 %v1911, %v1943
    %v1976 = vsub.f32 %v1912, %v1944
    %v1977 = vsub.f32 %v1913, %v1945
    %v1978 = vsub.f32 %v1914, %v1946
    %v1979 = vsub.f32 %v1915, %v1947
    %v1980 = vsub.f32 %v1916, %v1948
    %v1981 = vsub.f32 %v1917, %v1949
    %v1982 = vsub.f32 %v1918, %v1950
    %v1983 = vsub.f32 %v1919, %v1951
    %v1984 = vsub.f32 %v1920, %v1952
    %v1985 = vsub.f32 %v1921, %v1953
    %v1986 = vsub.f32 %v1922, %v1954
    %v1987 = vsub.f32 %v1923, %v1955
    %v1988 = vsub.f32 %v1924, %v1956
    %v1989 = vsub.f32 %v1925, %v1957
    %v1990 = vmul.f32 %v1958, -0.1
    %v1991 = vmul.f32 %v1959, -0.1
    %v1992 = vmul.f32 %v1960, -0.1
    %v1993 = vmul.f32 %v1961, -0.1
    %v1994 = vmul.f32 %v1962, -0.1
    %v1995 = vmul.f32 %v1963, -0.1
    %v1996 = vmul.f32 %v1964, -0.1
    %v1997 = vmul.f32 %v1965, -0.1
    %v1998 = vmul.f32 %v1966, -0.1
    %v1999 = vmul.f32 %v1967, -0.1
    %v2000 = vmul.f32 %v1968, -0.1
    %v2001 = vmul.f32 %v1969, -0.1
    %v2002 = vmul.f32 %v1970, -0.1
    %v2003 = vmul.f32 %v1971, -0.1
    %v2004 = vmul.f32 %v1972, -0.1
    %v2005 = vmul.f32 %v1973, -0.1
    %v2006 = vmul.f32 %v1974, -0.1
    %v2007 = vmul.f32 %v1975, -0.1
    %v2008 = vmul.f32 %v1976, -0.1
    %v2009 = vmul.f32 %v1977, -0.1
    %v2010 = vmul.f32 %v1978, -0.1
    %v2011 = vmul.f32 %v1979, -0.1
    %v2012 = vmul.f32 %v1980, -0.1
    %v2013 = vmul.f32 %v1981, -0.1
    %v2014 = vmul.f32 %v1982, -0.1
    %v2015 = vmul.f32 %v1983, -0.1
    %v2016 = vmul.f32 %v1984, -0.1
    %v2017 = vmul.f32 %v1985, -0.1
    %v2018 = vmul.f32 %v1986, -0.1
    %v2019 = vmul.f32 %v1987, -0.1
    %v2020 = vmul.f32 %v1988, -0.1
    %v2021 = vmul.f32 %v1989, -0.1
    %v2022 = vmul.f32 %v1990, 1.442695
    %v2023 = vpow.pop %v2022
    %v2024 = vmul.f32 %v1991, 1.442695
    %v2025 = vpow.pop %v2024
    %v2026 = vmul.f32 %v1992, 1.442695
    %v2027 = vpow.pop %v2026
    %v2028 = vmul.f32 %v1993, 1.442695
    %v2029 = vpow.pop %v2028
    %v2030 = vmul.f32 %v1994, 1.442695
    %v2031 = vpow.pop %v2030
    %v2032 = vmul.f32 %v1995, 1.442695
    %v2033 = vpow.pop %v2032
    %v2034 = vmul.f32 %v1996, 1.442695
    %v2035 = vpow.pop %v2034
    %v2036 = vmul.f32 %v1997, 1.442695
    %v2037 = vpow.pop %v2036
    %v2038 = vmul.f32 %v1998, 1.442695
    %v2039 = vpow.pop %v2038
    %v2040 = vmul.f32 %v1999, 1.442695
    %v2041 = vpow.pop %v2040
    %v2042 = vmul.f32 %v2000, 1.442695
    %v2043 = vpow.pop %v2042
    %v2044 = vmul.f32 %v2001, 1.442695
    %v2045 = vpow.pop %v2044
    %v2046 = vmul.f32 %v2002, 1.442695
    %v2047 = vpow.pop %v2046
    %v2048 = vmul.f32 %v2003, 1.442695
    %v2049 = vpow.pop %v2048
    %v2050 = vmul.f32 %v2004, 1.442695
    %v2051 = vpow.pop %v2050
    %v2052 = vmul.f32 %v2005, 1.442695
    %v2053 = vpow.pop %v2052
    %v2054 = vmul.f32 %v2006, 1.442695
    %v2055 = vpow.pop %v2054
    %v2056 = vmul.f32 %v2007, 1.442695
    %v2057 = vpow.pop %v2056
    %v2058 = vmul.f32 %v2008, 1.442695
    %v2059 = vpow.pop %v2058
    %v2060 = vmul.f32 %v2009, 1.442695
    %v2061 = vpow.pop %v2060
    %v2062 = vmul.f32 %v2010, 1.442695
    %v2063 = vpow.pop %v2062
    %v2064 = vmul.f32 %v2011, 1.442695
    %v2065 = vpow.pop %v2064
    %v2066 = vmul.f32 %v2012, 1.442695
    %v2067 = vpow.pop %v2066
    %v2068 = vmul.f32 %v2013, 1.442695
    %v2069 = vpow.pop %v2068
    %v2070 = vmul.f32 %v2014, 1.442695
    %v2071 = vpow.pop %v2070
    %v2072 = vmul.f32 %v2015, 1.442695
    %v2073 = vpow.pop %v2072
    %v2074 = vmul.f32 %v2016, 1.442695
    %v2075 = vpow.pop %v2074
    %v2076 = vmul.f32 %v2017, 1.442695
    %v2077 = vpow.pop %v2076
    %v2078 = vmul.f32 %v2018, 1.442695
    %v2079 = vpow.pop %v2078
    %v2080 = vmul.f32 %v2019, 1.442695
    %v2081 = vpow.pop %v2080
    %v2082 = vmul.f32 %v2020, 1.442695
    %v2083 = vpow.pop %v2082
    %v2084 = vmul.f32 %v2021, 1.442695
    %v2085 = vpow.pop %v2084
    %v2086 = vcombine.low %v2023, %v2027
    %v2087 = vcombine.high %v2023, %v2027
    %v2089 = vunpack.c.l.s4 1983009808
    %v2090 = vunpack.c.0.s8 %v2089
    %v2091 = vlaneseq
    %v2092 = vshrl.u32 %v2091, 7
    %v2093 = vsub.s32 %v2090, %v2092
    %v2094 = vrot.slane %v2086, %v2093
    %v2096 = vunpack.c.l.s4 1983009808
    %v2097 = vunpack.c.0.s8 %v2096
    %v2098 = vlaneseq
    %v2099 = vshrl.u32 %v2098, 7
    %v2100 = vsub.s32 %v2097, %v2099
    %v2101 = vrot.slane %v2087, %v2100
    %v2102 = vcombine.low %v2025, %v2029
    %v2103 = vcombine.high %v2025, %v2029
    %v2105 = vunpack.c.l.s4 1983009808
    %v2106 = vunpack.c.0.s8 %v2105
    %v2107 = vlaneseq
    %v2108 = vshrl.u32 %v2107, 7
    %v2109 = vsub.s32 %v2106, %v2108
    %v2110 = vrot.slane %v2102, %v2109
    %v2112 = vunpack.c.l.s4 1983009808
    %v2113 = vunpack.c.0.s8 %v2112
    %v2114 = vlaneseq
    %v2115 = vshrl.u32 %v2114, 7
    %v2116 = vsub.s32 %v2113, %v2115
    %v2117 = vrot.slane %v2103, %v2116
    %v2118 = vcombine.low %v2031, %v2035
    %v2119 = vcombine.high %v2031, %v2035
    %v2121 = vunpack.c.l.s4 1983009808
    %v2122 = vunpack.c.0.s8 %v2121
    %v2123 = vlaneseq
    %v2124 = vshrl.u32 %v2123, 7
    %v2125 = vsub.s32 %v2122, %v2124
    %v2126 = vrot.slane %v2118, %v2125
    %v2128 = vunpack.c.l.s4 1983009808
    %v2129 = vunpack.c.0.s8 %v2128
    %v2130 = vlaneseq
    %v2131 = vshrl.u32 %v2130, 7
    %v2132 = vsub.s32 %v2129, %v2131
    %v2133 = vrot.slane %v2119, %v2132
    %v2134 = vcombine.low %v2033, %v2037
    %v2135 = vcombine.high %v2033, %v2037
    %v2137 = vunpack.c.l.s4 1983009808
    %v2138 = vunpack.c.0.s8 %v2137
    %v2139 = vlaneseq
    %v2140 = vshrl.u32 %v2139, 7
    %v2141 = vsub.s32 %v2138, %v2140
    %v2142 = vrot.slane %v2134, %v2141
    %v2144 = vunpack.c.l.s4 1983009808
    %v2145 = vunpack.c.0.s8 %v2144
    %v2146 = vlaneseq
    %v2147 = vshrl.u32 %v2146, 7
    %v2148 = vsub.s32 %v2145, %v2147
    %v2149 = vrot.slane %v2135, %v2148
    %v2150 = vcombine.low %v2094, %v2110
    %v2151 = vcombine.high %v2094, %v2110
    %v2153 = vunpack.c.l.s4 1934713408
    %v2154 = vunpack.c.0.s8 %v2153
    %v2155 = vlaneseq
    %v2156 = vshrl.u32 %v2155, 7
    %v2157 = vsub.s32 %v2154, %v2156
    %v2158 = vrot.slane %v2150, %v2157
    %v2160 = vunpack.c.l.s4 1934713408
    %v2161 = vunpack.c.0.s8 %v2160
    %v2162 = vlaneseq
    %v2163 = vshrl.u32 %v2162, 7
    %v2164 = vsub.s32 %v2161, %v2163
    %v2165 = vrot.slane %v2151, %v2164
    %v2166 = vcombine.low %v2101, %v2117
    %v2167 = vcombine.high %v2101, %v2117
    %v2169 = vunpack.c.l.s4 1934713408
    %v2170 = vunpack.c.0.s8 %v2169
    %v2171 = vlaneseq
    %v2172 = vshrl.u32 %v2171, 7
    %v2173 = vsub.s32 %v2170, %v2172
    %v2174 = vrot.slane %v2166, %v2173
    %v2176 = vunpack.c.l.s4 1934713408
    %v2177 = vunpack.c.0.s8 %v2176
    %v2178 = vlaneseq
    %v2179 = vshrl.u32 %v2178, 7
    %v2180 = vsub.s32 %v2177, %v2179
    %v2181 = vrot.slane %v2167, %v2180
    %v2182 = vcombine.low %v2126, %v2142
    %v2183 = vcombine.high %v2126, %v2142
    %v2185 = vunpack.c.l.s4 1934713408
    %v2186 = vunpack.c.0.s8 %v2185
    %v2187 = vlaneseq
    %v2188 = vshrl.u32 %v2187, 7
    %v2189 = vsub.s32 %v2186, %v2188
    %v2190 = vrot.slane %v2182, %v2189
    %v2192 = vunpack.c.l.s4 1934713408
    %v2193 = vunpack.c.0.s8 %v2192
    %v2194 = vlaneseq
    %v2195 = vshrl.u32 %v2194, 7
    %v2196 = vsub.s32 %v2193, %v2195
    %v2197 = vrot.slane %v2183, %v2196
    %v2198 = vcombine.low %v2133, %v2149
    %v2199 = vcombine.high %v2133, %v2149
    %v2201 = vunpack.c.l.s4 1934713408
    %v2202 = vunpack.c.0.s8 %v2201
    %v2203 = vlaneseq
    %v2204 = vshrl.u32 %v2203, 7
    %v2205 = vsub.s32 %v2202, %v2204
    %v2206 = vrot.slane %v2198, %v2205
    %v2208 = vunpack.c.l.s4 1934713408
    %v2209 = vunpack.c.0.s8 %v2208
    %v2210 = vlaneseq
    %v2211 = vshrl.u32 %v2210, 7
    %v2212 = vsub.s32 %v2209, %v2211
    %v2213 = vrot.slane %v2199, %v2212
    %v2214 = vcombine.low %v2158, %v2190
    %v2215 = vcombine.high %v2158, %v2190
    %v2216 = vcombine.low %v2165, %v2197
    %v2217 = vcombine.high %v2165, %v2197
    %v2218 = vcombine.low %v2174, %v2206
    %v2219 = vcombine.high %v2174, %v2206
    %v2220 = vcombine.low %v2181, %v2213
    %v2221 = vcombine.high %v2181, %v2213
    %v2222 = vcombine.low %v2039, %v2043
    %v2223 = vcombine.high %v2039, %v2043
    %v2225 = vunpack.c.l.s4 1983009808
    %v2226 = vunpack.c.0.s8 %v2225
    %v2227 = vlaneseq
    %v2228 = vshrl.u32 %v2227, 7
    %v2229 = vsub.s32 %v2226, %v2228
    %v2230 = vrot.slane %v2222, %v2229
    %v2232 = vunpack.c.l.s4 1983009808
    %v2233 = vunpack.c.0.s8 %v2232
    %v2234 = vlaneseq
    %v2235 = vshrl.u32 %v2234, 7
    %v2236 = vsub.s32 %v2233, %v2235
    %v2237 = vrot.slane %v2223, %v2236
    %v2238 = vcombine.low %v2041, %v2045
    %v2239 = vcombine.high %v2041, %v2045
    %v2241 = vunpack.c.l.s4 1983009808
    %v2242 = vunpack.c.0.s8 %v2241
    %v2243 = vlaneseq
    %v2244 = vshrl.u32 %v2243, 7
    %v2245 = vsub.s32 %v2242, %v2244
    %v2246 = vrot.slane %v2238, %v2245
    %v2248 = vunpack.c.l.s4 1983009808
    %v2249 = vunpack.c.0.s8 %v2248
    %v2250 = vlaneseq
    %v2251 = vshrl.u32 %v2250, 7
    %v2252 = vsub.s32 %v2249, %v2251
    %v2253 = vrot.slane %v2239, %v2252
    %v2254 = vcombine.low %v2047, %v2051
    %v2255 = vcombine.high %v2047, %v2051
    %v2257 = vunpack.c.l.s4 1983009808
    %v2258 = vunpack.c.0.s8 %v2257
    %v2259 = vlaneseq
    %v2260 = vshrl.u32 %v2259, 7
    %v2261 = vsub.s32 %v2258, %v2260
    %v2262 = vrot.slane %v2254, %v2261
    %v2264 = vunpack.c.l.s4 1983009808
    %v2265 = vunpack.c.0.s8 %v2264
    %v2266 = vlaneseq
    %v2267 = vshrl.u32 %v2266, 7
    %v2268 = vsub.s32 %v2265, %v2267
    %v2269 = vrot.slane %v2255, %v2268
    %v2270 = vcombine.low %v2049, %v2053
    %v2271 = vcombine.high %v2049, %v2053
    %v2273 = vunpack.c.l.s4 1983009808
    %v2274 = vunpack.c.0.s8 %v2273
    %v2275 = vlaneseq
    %v2276 = vshrl.u32 %v2275, 7
    %v2277 = vsub.s32 %v2274, %v2276
    %v2278 = vrot.slane %v2270, %v2277
    %v2280 = vunpack.c.l.s4 1983009808
    %v2281 = vunpack.c.0.s8 %v2280
    %v2282 = vlaneseq
    %v2283 = vshrl.u32 %v2282, 7
    %v2284 = vsub.s32 %v2281, %v2283
    %v2285 = vrot.slane %v2271, %v2284
    %v2286 = vcombine.low %v2230, %v2246
    %v2287 = vcombine.high %v2230, %v2246
    %v2289 = vunpack.c.l.s4 1934713408
    %v2290 = vunpack.c.0.s8 %v2289
    %v2291 = vlaneseq
    %v2292 = vshrl.u32 %v2291, 7
    %v2293 = vsub.s32 %v2290, %v2292
    %v2294 = vrot.slane %v2286, %v2293
    %v2296 = vunpack.c.l.s4 1934713408
    %v2297 = vunpack.c.0.s8 %v2296
    %v2298 = vlaneseq
    %v2299 = vshrl.u32 %v2298, 7
    %v2300 = vsub.s32 %v2297, %v2299
    %v2301 = vrot.slane %v2287, %v2300
    %v2302 = vcombine.low %v2237, %v2253
    %v2303 = vcombine.high %v2237, %v2253
    %v2305 = vunpack.c.l.s4 1934713408
    %v2306 = vunpack.c.0.s8 %v2305
    %v2307 = vlaneseq
    %v2308 = vshrl.u32 %v2307, 7
    %v2309 = vsub.s32 %v2306, %v2308
    %v2310 = vrot.slane %v2302, %v2309
    %v2312 = vunpack.c.l.s4 1934713408
    %v2313 = vunpack.c.0.s8 %v2312
    %v2314 = vlaneseq
    %v2315 = vshrl.u32 %v2314, 7
    %v2316 = vsub.s32 %v2313, %v2315
    %v2317 = vrot.slane %v2303, %v2316
    %v2318 = vcombine.low %v2262, %v2278
    %v2319 = vcombine.high %v2262, %v2278
    %v2321 = vunpack.c.l.s4 1934713408
    %v2322 = vunpack.c.0.s8 %v2321
    %v2323 = vlaneseq
    %v2324 = vshrl.u32 %v2323, 7
    %v2325 = vsub.s32 %v2322, %v2324
    %v2326 = vrot.slane %v2318, %v2325
    %v2328 = vunpack.c.l.s4 1934713408
    %v2329 = vunpack.c.0.s8 %v2328
    %v2330 = vlaneseq
    %v2331 = vshrl.u32 %v2330, 7
    %v2332 = vsub.s32 %v2329, %v2331
    %v2333 = vrot.slane %v2319, %v2332
    %v2334 = vcombine.low %v2269, %v2285
    %v2335 = vcombine.high %v2269, %v2285
    %v2337 = vunpack.c.l.s4 1934713408
    %v2338 = vunpack.c.0.s8 %v2337
    %v2339 = vlaneseq
    %v2340 = vshrl.u32 %v2339, 7
    %v2341 = vsub.s32 %v2338, %v2340
    %v2342 = vrot.slane %v2334, %v2341
    %v2344 = vunpack.c.l.s4 1934713408
    %v2345 = vunpack.c.0.s8 %v2344
    %v2346 = vlaneseq
    %v2347 = vshrl.u32 %v2346, 7
    %v2348 = vsub.s32 %v2345, %v2347
    %v2349 = vrot.slane %v2335, %v2348
    %v2350 = vcombine.low %v2294, %v2326
    %v2351 = vcombine.high %v2294, %v2326
    %v2352 = vcombine.low %v2301, %v2333
    %v2353 = vcombine.high %v2301, %v2333
    %v2354 = vcombine.low %v2310, %v2342
    %v2355 = vcombine.high %v2310, %v2342
    %v2356 = vcombine.low %v2317, %v2349
    %v2357 = vcombine.high %v2317, %v2349
    %v2358 = vcombine.low %v2055, %v2059
    %v2359 = vcombine.high %v2055, %v2059
    %v2361 = vunpack.c.l.s4 1983009808
    %v2362 = vunpack.c.0.s8 %v2361
    %v2363 = vlaneseq
    %v2364 = vshrl.u32 %v2363, 7
    %v2365 = vsub.s32 %v2362, %v2364
    %v2366 = vrot.slane %v2358, %v2365
    %v2368 = vunpack.c.l.s4 1983009808
    %v2369 = vunpack.c.0.s8 %v2368
    %v2370 = vlaneseq
    %v2371 = vshrl.u32 %v2370, 7
    %v2372 = vsub.s32 %v2369, %v2371
    %v2373 = vrot.slane %v2359, %v2372
    %v2374 = vcombine.low %v2057, %v2061
    %v2375 = vcombine.high %v2057, %v2061
    %v2377 = vunpack.c.l.s4 1983009808
    %v2378 = vunpack.c.0.s8 %v2377
    %v2379 = vlaneseq
    %v2380 = vshrl.u32 %v2379, 7
    %v2381 = vsub.s32 %v2378, %v2380
    %v2382 = vrot.slane %v2374, %v2381
    %v2384 = vunpack.c.l.s4 1983009808
    %v2385 = vunpack.c.0.s8 %v2384
    %v2386 = vlaneseq
    %v2387 = vshrl.u32 %v2386, 7
    %v2388 = vsub.s32 %v2385, %v2387
    %v2389 = vrot.slane %v2375, %v2388
    %v2390 = vcombine.low %v2063, %v2067
    %v2391 = vcombine.high %v2063, %v2067
    %v2393 = vunpack.c.l.s4 1983009808
    %v2394 = vunpack.c.0.s8 %v2393
    %v2395 = vlaneseq
    %v2396 = vshrl.u32 %v2395, 7
    %v2397 = vsub.s32 %v2394, %v2396
    %v2398 = vrot.slane %v2390, %v2397
    %v2400 = vunpack.c.l.s4 1983009808
    %v2401 = vunpack.c.0.s8 %v2400
    %v2402 = vlaneseq
    %v2403 = vshrl.u32 %v2402, 7
    %v2404 = vsub.s32 %v2401, %v2403
    %v2405 = vrot.slane %v2391, %v2404
    %v2406 = vcombine.low %v2065, %v2069
    %v2407 = vcombine.high %v2065, %v2069
    %v2409 = vunpack.c.l.s4 1983009808
    %v2410 = vunpack.c.0.s8 %v2409
    %v2411 = vlaneseq
    %v2412 = vshrl.u32 %v2411, 7
    %v2413 = vsub.s32 %v2410, %v2412
    %v2414 = vrot.slane %v2406, %v2413
    %v2416 = vunpack.c.l.s4 1983009808
    %v2417 = vunpack.c.0.s8 %v2416
    %v2418 = vlaneseq
    %v2419 = vshrl.u32 %v2418, 7
    %v2420 = vsub.s32 %v2417, %v2419
    %v2421 = vrot.slane %v2407, %v2420
    %v2422 = vcombine.low %v2366, %v2382
    %v2423 = vcombine.high %v2366, %v2382
    %v2425 = vunpack.c.l.s4 1934713408
    %v2426 = vunpack.c.0.s8 %v2425
    %v2427 = vlaneseq
    %v2428 = vshrl.u32 %v2427, 7
    %v2429 = vsub.s32 %v2426, %v2428
    %v2430 = vrot.slane %v2422, %v2429
    %v2432 = vunpack.c.l.s4 1934713408
    %v2433 = vunpack.c.0.s8 %v2432
    %v2434 = vlaneseq
    %v2435 = vshrl.u32 %v2434, 7
    %v2436 = vsub.s32 %v2433, %v2435
    %v2437 = vrot.slane %v2423, %v2436
    %v2438 = vcombine.low %v2373, %v2389
    %v2439 = vcombine.high %v2373, %v2389
    %v2441 = vunpack.c.l.s4 1934713408
    %v2442 = vunpack.c.0.s8 %v2441
    %v2443 = vlaneseq
    %v2444 = vshrl.u32 %v2443, 7
    %v2445 = vsub.s32 %v2442, %v2444
    %v2446 = vrot.slane %v2438, %v2445
    %v2448 = vunpack.c.l.s4 1934713408
    %v2449 = vunpack.c.0.s8 %v2448
    %v2450 = vlaneseq
    %v2451 = vshrl.u32 %v2450, 7
    %v2452 = vsub.s32 %v2449, %v2451
    %v2453 = vrot.slane %v2439, %v2452
    %v2454 = vcombine.low %v2398, %v2414
    %v2455 = vcombine.high %v2398, %v2414
    %v2457 = vunpack.c.l.s4 1934713408
    %v2458 = vunpack.c.0.s8 %v2457
    %v2459 = vlaneseq
    %v2460 = vshrl.u32 %v2459, 7
    %v2461 = vsub.s32 %v2458, %v2460
    %v2462 = vrot.slane %v2454, %v2461
    %v2464 = vunpack.c.l.s4 1934713408
    %v2465 = vunpack.c.0.s8 %v2464
    %v2466 = vlaneseq
    %v2467 = vshrl.u32 %v2466, 7
    %v2468 = vsub.s32 %v2465, %v2467
    %v2469 = vrot.slane %v2455, %v2468
    %v2470 = vcombine.low %v2405, %v2421
    %v2471 = vcombine.high %v2405, %v2421
    %v2473 = vunpack.c.l.s4 1934713408
    %v2474 = vunpack.c.0.s8 %v2473
    %v2475 = vlaneseq
    %v2476 = vshrl.u32 %v2475, 7
    %v2477 = vsub.s32 %v2474, %v2476
    %v2478 = vrot.slane %v2470, %v2477
    %v2480 = vunpack.c.l.s4 1934713408
    %v2481 = vunpack.c.0.s8 %v2480
    %v2482 = vlaneseq
    %v2483 = vshrl.u32 %v2482, 7
    %v2484 = vsub.s32 %v2481, %v2483
    %v2485 = vrot.slane %v2471, %v2484
    %v2486 = vcombine.low %v2430, %v2462
    %v2487 = vcombine.high %v2430, %v2462
    %v2488 = vcombine.low %v2437, %v2469
    %v2489 = vcombine.high %v2437, %v2469
    %v2490 = vcombine.low %v2446, %v2478
    %v2491 = vcombine.high %v2446, %v2478
    %v2492 = vcombine.low %v2453, %v2485
    %v2493 = vcombine.high %v2453, %v2485
    %v2494 = vcombine.low %v2071, %v2075
    %v2495 = vcombine.high %v2071, %v2075
    %v2497 = vunpack.c.l.s4 1983009808
    %v2498 = vunpack.c.0.s8 %v2497
    %v2499 = vlaneseq
    %v2500 = vshrl.u32 %v2499, 7
    %v2501 = vsub.s32 %v2498, %v2500
    %v2502 = vrot.slane %v2494, %v2501
    %v2504 = vunpack.c.l.s4 1983009808
    %v2505 = vunpack.c.0.s8 %v2504
    %v2506 = vlaneseq
    %v2507 = vshrl.u32 %v2506, 7
    %v2508 = vsub.s32 %v2505, %v2507
    %v2509 = vrot.slane %v2495, %v2508
    %v2510 = vcombine.low %v2073, %v2077
    %v2511 = vcombine.high %v2073, %v2077
    %v2513 = vunpack.c.l.s4 1983009808
    %v2514 = vunpack.c.0.s8 %v2513
    %v2515 = vlaneseq
    %v2516 = vshrl.u32 %v2515, 7
    %v2517 = vsub.s32 %v2514, %v2516
    %v2518 = vrot.slane %v2510, %v2517
    %v2520 = vunpack.c.l.s4 1983009808
    %v2521 = vunpack.c.0.s8 %v2520
    %v2522 = vlaneseq
    %v2523 = vshrl.u32 %v2522, 7
    %v2524 = vsub.s32 %v2521, %v2523
    %v2525 = vrot.slane %v2511, %v2524
    %v2526 = vcombine.low %v2079, %v2083
    %v2527 = vcombine.high %v2079, %v2083
    %v2529 = vunpack.c.l.s4 1983009808
    %v2530 = vunpack.c.0.s8 %v2529
    %v2531 = vlaneseq
    %v2532 = vshrl.u32 %v2531, 7
    %v2533 = vsub.s32 %v2530, %v2532
    %v2534 = vrot.slane %v2526, %v2533
    %v2536 = vunpack.c.l.s4 1983009808
    %v2537 = vunpack.c.0.s8 %v2536
    %v2538 = vlaneseq
    %v2539 = vshrl.u32 %v2538, 7
    %v2540 = vsub.s32 %v2537, %v2539
    %v2541 = vrot.slane %v2527, %v2540
    %v2542 = vcombine.low %v2081, %v2085
    %v2543 = vcombine.high %v2081, %v2085
    %v2545 = vunpack.c.l.s4 1983009808
    %v2546 = vunpack.c.0.s8 %v2545
    %v2547 = vlaneseq
    %v2548 = vshrl.u32 %v2547, 7
    %v2549 = vsub.s32 %v2546, %v2548
    %v2550 = vrot.slane %v2542, %v2549
    %v2552 = vunpack.c.l.s4 1983009808
    %v2553 = vunpack.c.0.s8 %v2552
    %v2554 = vlaneseq
    %v2555 = vshrl.u32 %v2554, 7
    %v2556 = vsub.s32 %v2553, %v2555
    %v2557 = vrot.slane %v2543, %v2556
    %v2558 = vcombine.low %v2502, %v2518
    %v2559 = vcombine.high %v2502, %v2518
    %v2561 = vunpack.c.l.s4 1934713408
    %v2562 = vunpack.c.0.s8 %v2561
    %v2563 = vlaneseq
    %v2564 = vshrl.u32 %v2563, 7
    %v2565 = vsub.s32 %v2562, %v2564
    %v2566 = vrot.slane %v2558, %v2565
    %v2568 = vunpack.c.l.s4 1934713408
    %v2569 = vunpack.c.0.s8 %v2568
    %v2570 = vlaneseq
    %v2571 = vshrl.u32 %v2570, 7
    %v2572 = vsub.s32 %v2569, %v2571
    %v2573 = vrot.slane %v2559, %v2572
    %v2574 = vcombine.low %v2509, %v2525
    %v2575 = vcombine.high %v2509, %v2525
    %v2577 = vunpack.c.l.s4 1934713408
    %v2578 = vunpack.c.0.s8 %v2577
    %v2579 = vlaneseq
    %v2580 = vshrl.u32 %v2579, 7
    %v2581 = vsub.s32 %v2578, %v2580
    %v2582 = vrot.slane %v2574, %v2581
    %v2584 = vunpack.c.l.s4 1934713408
    %v2585 = vunpack.c.0.s8 %v2584
    %v2586 = vlaneseq
    %v2587 = vshrl.u32 %v2586, 7
    %v2588 = vsub.s32 %v2585, %v2587
    %v2589 = vrot.slane %v2575, %v2588
    %v2590 = vcombine.low %v2534, %v2550
    %v2591 = vcombine.high %v2534, %v2550
    %v2593 = vunpack.c.l.s4 1934713408
    %v2594 = vunpack.c.0.s8 %v2593
    %v2595 = vlaneseq
    %v2596 = vshrl.u32 %v2595, 7
    %v2597 = vsub.s32 %v2594, %v2596
    %v2598 = vrot.slane %v2590, %v2597
    %v2600 = vunpack.c.l.s4 1934713408
    %v2601 = vunpack.c.0.s8 %v2600
    %v2602 = vlaneseq
    %v2603 = vshrl.u32 %v2602, 7
    %v2604 = vsub.s32 %v2601, %v2603
    %v2605 = vrot.slane %v2591, %v2604
    %v2606 = vcombine.low %v2541, %v2557
    %v2607 = vcombine.high %v2541, %v2557
    %v2609 = vunpack.c.l.s4 1934713408
    %v2610 = vunpack.c.0.s8 %v2609
    %v2611 = vlaneseq
    %v2612 = vshrl.u32 %v2611, 7
    %v2613 = vsub.s32 %v2610, %v2612
    %v2614 = vrot.slane %v2606, %v2613
    %v2616 = vunpack.c.l.s4 1934713408
    %v2617 = vunpack.c.0.s8 %v2616
    %v2618 = vlaneseq
    %v2619 = vshrl.u32 %v2618, 7
    %v2620 = vsub.s32 %v2617, %v2619
    %v2621 = vrot.slane %v2607, %v2620
    %v2622 = vcombine.low %v2566, %v2598
    %v2623 = vcombine.high %v2566, %v2598
    %v2624 = vcombine.low %v2573, %v2605
    %v2625 = vcombine.high %v2573, %v2605
    %v2626 = vcombine.low %v2582, %v2614
    %v2627 = vcombine.high %v2582, %v2614
    %v2628 = vcombine.low %v2589, %v2621
    %v2629 = vcombine.high %v2589, %v2621
    %v2630 = vld [vmem:[#allocation6] sm:$0xff]
    %v2631 = vld [vmem:[#allocation6 + $0x8] sm:$0xff]
    %v2632 = vld [vmem:[#allocation6 + $0x10] sm:$0xff]
    %v2633 = vld [vmem:[#allocation6 + $0x18] sm:$0xff]
    %v2634 = vmul.f32 %v2214, %v2630
    %v2635 = vmul.f32 %v2350, %v2631
    %v2636 = vmul.f32 %v2486, %v2632
    %v2637 = vmul.f32 %v2622, %v2633
    %v2638 = vmul.f32 %v2215, %v2630
    %v2639 = vmul.f32 %v2351, %v2631
    %v2640 = vmul.f32 %v2487, %v2632
    %v2641 = vmul.f32 %v2623, %v2633
    %v2642 = vmul.f32 %v2216, %v2630
    %v2643 = vmul.f32 %v2352, %v2631
    %v2644 = vmul.f32 %v2488, %v2632
    %v2645 = vmul.f32 %v2624, %v2633
    %v2646 = vmul.f32 %v2217, %v2630
    %v2647 = vmul.f32 %v2353, %v2631
    %v2648 = vmul.f32 %v2489, %v2632
    %v2649 = vmul.f32 %v2625, %v2633
    %v2650 = vmul.f32 %v2218, %v2630
    %v2651 = vmul.f32 %v2354, %v2631
    %v2652 = vmul.f32 %v2490, %v2632
    %v2653 = vmul.f32 %v2626, %v2633
    %v2654 = vmul.f32 %v2219, %v2630
    %v2655 = vmul.f32 %v2355, %v2631
    %v2656 = vmul.f32 %v2491, %v2632
    %v2657 = vmul.f32 %v2627, %v2633
    %v2658 = vmul.f32 %v2220, %v2630
    %v2659 = vmul.f32 %v2356, %v2631
    %v2660 = vmul.f32 %v2492, %v2632
    %v2661 = vmul.f32 %v2628, %v2633
    %v2662 = vmul.f32 %v2221, %v2630
    %v2663 = vmul.f32 %v2357, %v2631
    %v2664 = vmul.f32 %v2493, %v2632
    %v2665 = vmul.f32 %v2629, %v2633
    %v2666 = vadd.f32 %v2634, %v2635
    %v2667 = vadd.f32 %v2666, %v2636
    %v2668 = vadd.f32 %v2667, %v2637
    %v2669 = vrot.slane %v2668, 4
    %v2670 = vadd.f32 %v2668, %v2669
    %v2671 = vrot.slane %v2670, 2
    %v2672 = vadd.f32 %v2670, %v2671
    %v2673 = vrot.slane %v2672, 1
    %v2674 = vadd.f32 %v2672, %v2673
    %v2675 = vadd.f32 %v2638, %v2639
    %v2676 = vadd.f32 %v2675, %v2640
    %v2677 = vadd.f32 %v2676, %v2641
    %v2678 = vrot.slane %v2677, 4
    %v2679 = vadd.f32 %v2677, %v2678
    %v2680 = vrot.slane %v2679, 2
    %v2681 = vadd.f32 %v2679, %v2680
    %v2682 = vrot.slane %v2681, 1
    %v2683 = vadd.f32 %v2681, %v2682
    %v2684 = vadd.f32 %v2642, %v2643
    %v2685 = vadd.f32 %v2684, %v2644
    %v2686 = vadd.f32 %v2685, %v2645
    %v2687 = vrot.slane %v2686, 4
    %v2688 = vadd.f32 %v2686, %v2687
    %v2689 = vrot.slane %v2688, 2
    %v2690 = vadd.f32 %v2688, %v2689
    %v2691 = vrot.slane %v2690, 1
    %v2692 = vadd.f32 %v2690, %v2691
    %v2693 = vadd.f32 %v2646, %v2647
    %v2694 = vadd.f32 %v2693, %v2648
    %v2695 = vadd.f32 %v2694, %v2649
    %v2696 = vrot.slane %v2695, 4
    %v2697 = vadd.f32 %v2695, %v2696
    %v2698 = vrot.slane %v2697, 2
    %v2699 = vadd.f32 %v2697, %v2698
    %v2700 = vrot.slane %v2699, 1
    %v2701 = vadd.f32 %v2699, %v2700
    %v2702 = vadd.f32 %v2650, %v2651
    %v2703 = vadd.f32 %v2702, %v2652
    %v2704 = vadd.f32 %v2703, %v2653
    %v2705 = vrot.slane %v2704, 4
    %v2706 = vadd.f32 %v2704, %v2705
    %v2707 = vrot.slane %v2706, 2
    %v2708 = vadd.f32 %v2706, %v2707
    %v2709 = vrot.slane %v2708, 1
    %v2710 = vadd.f32 %v2708, %v2709
    %v2711 = vadd.f32 %v2654, %v2655
    %v2712 = vadd.f32 %v2711, %v2656
    %v2713 = vadd.f32 %v2712, %v2657
    %v2714 = vrot.slane %v2713, 4
    %v2715 = vadd.f32 %v2713, %v2714
    %v2716 = vrot.slane %v2715, 2
    %v2717 = vadd.f32 %v2715, %v2716
    %v2718 = vrot.slane %v2717, 1
    %v2719 = vadd.f32 %v2717, %v2718
    %v2720 = vadd.f32 %v2658, %v2659
    %v2721 = vadd.f32 %v2720, %v2660
    %v2722 = vadd.f32 %v2721, %v2661
    %v2723 = vrot.slane %v2722, 4
    %v2724 = vadd.f32 %v2722, %v2723
    %v2725 = vrot.slane %v2724, 2
    %v2726 = vadd.f32 %v2724, %v2725
    %v2727 = vrot.slane %v2726, 1
    %v2728 = vadd.f32 %v2726, %v2727
    %v2729 = vadd.f32 %v2662, %v2663
    %v2730 = vadd.f32 %v2729, %v2664
    %v2731 = vadd.f32 %v2730, %v2665
    %v2732 = vrot.slane %v2731, 4
    %v2733 = vadd.f32 %v2731, %v2732
    %v2734 = vrot.slane %v2733, 2
    %v2735 = vadd.f32 %v2733, %v2734
    %v2736 = vrot.slane %v2735, 1
    %v2737 = vadd.f32 %v2735, %v2736
    %v2738 = vld [vmem:[#allocation7] sm:$0x1]
    %v2740 = vlaneseq
    %v2741 = vshrl.u32 %v2740, 7
    %v2742 = vsub.s32 0, %v2741
    %v2743 = vrot.slane %v2738, %v2742
    %v2745 = vadd.f32 %v2674, %v2743
    %v2746 = vadd.f32 %v2683, %v2743
    %v2747 = vadd.f32 %v2692, %v2743
    %v2748 = vadd.f32 %v2701, %v2743
    %v2749 = vadd.f32 %v2710, %v2743
    %v2750 = vadd.f32 %v2719, %v2743
    %v2751 = vadd.f32 %v2728, %v2743
    %v2752 = vadd.f32 %v2737, %v2743
    %v2753 = vld [vmem:[%s5] sm:$0xff]
    %v2755 = vrot.slane %v2753, 1
    %v2756 = vrot.slane %v2753, 2
    %v2757 = vrot.slane %v2753, 3
    %v2758 = vrot.slane %v2753, 4
    %v2759 = vrot.slane %v2753, 5
    %v2760 = vrot.slane %v2753, 6
    %v2761 = vrot.slane %v2753, 7
    %v2770 = vmul.f32 %v2745, %v2753
    %v2771 = vmul.f32 %v2746, %v2755
    %v2772 = vmul.f32 %v2747, %v2756
    %v2773 = vmul.f32 %v2748, %v2757
    %v2774 = vmul.f32 %v2749, %v2758
    %v2775 = vmul.f32 %v2750, %v2759
    %v2776 = vmul.f32 %v2751, %v2760
    %v2777 = vmul.f32 %v2752, %v2761
    %v2786 = vrot.slane %v2771, 7
    %vm2787 = vcmask 1041409
    %v2788 = vsel %vm2787, %v2786, %v2770
    %v2789 = vrot.slane %v2772, 6
    %vm2790 = vcmask 1042434
    %v2791 = vsel %vm2790, %v2789, %v2788
    %v2792 = vrot.slane %v2773, 5
    %vm2793 = vcmask 1043459
    %v2794 = vsel %vm2793, %v2792, %v2791
    %v2795 = vrot.slane %v2774, 4
    %vm2796 = vcmask 1044484
    %v2797 = vsel %vm2796, %v2795, %v2794
    %v2798 = vrot.slane %v2775, 3
    %vm2799 = vcmask 1045509
    %v2800 = vsel %vm2799, %v2798, %v2797
    %v2801 = vrot.slane %v2776, 2
    %vm2802 = vcmask 1046534
    %v2803 = vsel %vm2802, %v2801, %v2800
    %v2804 = vrot.slane %v2777, 1
    %vm2805 = vcmask 1047559
    %v2806 = vsel %vm2805, %v2804, %v2803
    %2808 = vst [vmem:[%s6] sm:$0xff] %v2806
    // Predicated region
    $region42: #{_lambda_.1} parent=1 // pred_check
      _
    $region43: #{_lambda_.1} parent=1 // pred_check_branch
      %2810 = sbr.rel (0) target = $region45
    $region44: #{_lambda_.1} parent=1 // pred_region
      _
    $region45: #{_lambda_.1} parent=1 // pred_fallthru
      _
    // Predicated region
    $region46: #{_lambda_.1} parent=1 // pred_check
      _
    $region47: #{_lambda_.1} parent=1 // pred_check_branch
      %2812 = sbr.rel (0) target = $region49
    $region48: #{_lambda_.1} parent=1 // pred_region
      _
    $region49: #{_lambda_.1} parent=1 // pred_fallthru
      _
    %2813 = vsyncpa [#allocation3], 1
    %2814 = vsyncpa [#allocation5], 1
    %2815 = vsyncpa [#allocation8], 1

</llo_original>
